<compile_context>
chip_gen: v5e
topology: v5e:2x2
jax: 0.10.0
libtpu: 0.0.40
codegen_flags: <defaults>
</compile_context>

<pallas_src>
import functools

import numpy as np
import jax
import jax.numpy as jnp
from jax import lax
from jax.experimental import pallas as pl
from jax.experimental.pallas import tpu as pltpu


# ----------------------------------------------------------------------------
# Fused whole-network kernel
# ----------------------------------------------------------------------------
def _qnet_kernel(x_ref, w1_ref, b1_ref, w2_ref, b2_ref, w3_ref, b3_ref,
                 wh_ref, bh_ref, o_ref):
    """Conv1 + ReLU + Conv2 + ReLU + Dense + ReLU + dueling head, one kernel.

    x_ref : [B, H, W*C]            input rows, (w, c) flattened per row
    w1_ref: [3, W*C, OW1*OC1]      conv1 width-Toeplitz weights per row-tap
    b1_ref: [1, OW1*OC1]           conv1 bias tiled over OW1
    w2_ref: [3, OW1*OC1, OW2*OC2]  conv2 width-Toeplitz weights per row-tap
    b2_ref: [1, OW2*OC2]
    w3_ref: [OH2*OW2*OC2, hid]     dense, rows permuted to (h, w, c) order
    b3_ref: [1, hid]
    wh_ref: [hid, 128]             dueling head with Q-combine pre-folded,
                                   cols >= A are zero
    bh_ref: [1, 128]
    o_ref : [B, 128]               Q in columns 0..A-1
    """
    H = x_ref.shape[1]
    OH1 = H // 2
    OH2 = OH1 // 2
    RB = w2_ref.shape[2]          # conv2 row width == w3 row-block size

    # ---- conv1: each output row is <=3 contiguous-input-row matmuls --------
    rows1 = []
    for oh in range(OH1):
        acc = None
        for i in range(3):                      # row taps (stride 2, pad 1)
            r = 2 * oh + i - 1
            if r < 0 or r >= H:                 # zero-pad row: no contribution
                continue
            t = jnp.dot(x_ref[:, r, :], w1_ref[i],
                        preferred_element_type=jnp.float32)
            acc = t if acc is None else acc + t
        rows1.append(jnp.maximum(acc + b1_ref[...], 0.0))   # [B, OW1*OC1]

    # ---- conv2 fused with Dense(512->64): stream each conv2 row into the
    # ---- hidden accumulation (hidden += row @ w3_rowblock) -----------------
    hidden = None
    for oh in range(OH2):
        acc = None
        for i in range(3):
            r = 2 * oh + i - 1
            if r < 0 or r >= OH1:
                continue
            t = jnp.dot(rows1[r], w2_ref[i], preferred_element_type=jnp.float32)
            acc = t if acc is None else acc + t
        row2 = jnp.maximum(acc + b2_ref[...], 0.0)           # [B, OW2*OC2]
        t = jnp.dot(row2, w3_ref[oh * RB:(oh + 1) * RB, :],
                    preferred_element_type=jnp.float32)
        hidden = t if hidden is None else hidden + t
    hidden = jnp.maximum(hidden + b3_ref[...], 0.0)          # [B, hid]

    # ---- dueling head: combine pre-folded into (wh, bh) => matmul + bias ---
    q = jnp.dot(hidden, wh_ref[...], preferred_element_type=jnp.float32)
    o_ref[...] = (q + bh_ref[...]).astype(o_ref.dtype)


def qnetwork_pallas(xr, kp, num_actions):
    """xr: [B, H, W*C] -> Q: [B, num_actions] via one fused pallas_call."""
    B = xr.shape[0]
    args = (xr, kp["w1t"], kp["b1"], kp["w2t"], kp["b2"],
            kp["w3"], kp["b3"], kp["wh"], kp["bh"])

    def fullspec(a):
        nd = a.ndim
        return pl.BlockSpec(a.shape, lambda i, nd=nd: (0,) * nd)

    ocp = kp["wh"].shape[1]
    qp = pl.pallas_call(
        _qnet_kernel,
        out_shape=jax.ShapeDtypeStruct((B, ocp), jnp.float32),
        grid=(1,),
        in_specs=[fullspec(a) for a in args],
        out_specs=pl.BlockSpec((B, ocp), lambda i: (0, 0)),
        compiler_params=pltpu.CompilerParams(
            dimension_semantics=("arbitrary",)),
    )(*args)
    return qp[:, :num_actions]


# ----------------------------------------------------------------------------
# Parameter init (deterministic, PyTorch-style fan-in uniform bounds)
# ----------------------------------------------------------------------------
def _uniform(key, shape, fan_in):
    bound = 1.0 / jnp.sqrt(jnp.float32(fan_in))
    return jax.random.uniform(key, shape, jnp.float32, -bound, bound)


def init_params(key, in_channels, num_actions):
    ks = jax.random.split(key, 10)
    p = {}
    p["w1"] = _uniform(ks[0], (16, in_channels, 3, 3), in_channels * 9)  # OIHW
    p["b1"] = _uniform(ks[1], (16,), in_channels * 9)
    p["w2"] = _uniform(ks[2], (32, 16, 3, 3), 16 * 9)
    p["b2"] = _uniform(ks[3], (32,), 16 * 9)
    p["w3"] = _uniform(ks[4], (512, 64), 512)      # rows in torch (C,H,W) order
    p["b3"] = _uniform(ks[5], (64,), 512)
    p["wv"] = _uniform(ks[6], (64, 1), 64)
    p["bv"] = _uniform(ks[7], (1,), 64)
    p["wa"] = _uniform(ks[8], (64, num_actions), 64)
    p["ba"] = _uniform(ks[9], (num_actions,), 64)
    return p


def prepare_params(p, image_hw, num_actions):
    """One-time layout transforms into kernel-friendly tensors (no zero-padded
    contractions; dueling combine folded into the head weights)."""
    H, W = image_hw
    assert H % 2 == 0 and W % 2 == 0, "3x3/s2/p1 row-tap indexing assumes even H, W"
    oc1, in_c, kh, kw = p["w1"].shape
    oc2 = p["w2"].shape[0]
    hid = p["w3"].shape[1]
    A = num_actions
    assert (kh, kw) == (3, 3)
    # Conv output dims from the real formula; assert they match the H//2
    # shortcut the kernel's static row indexing relies on.
    OH1, OW1 = (H + 2 - 3) // 2 + 1, (W + 2 - 3) // 2 + 1
    assert (OH1, OW1) == (H // 2, W // 2)
    OH2, OW2 = (OH1 + 2 - 3) // 2 + 1, (OW1 + 2 - 3) // 2 + 1
    assert (OH2, OW2) == (OH1 // 2, OW1 // 2)
    assert p["w3"].shape[0] == oc2 * OH2 * OW2
    assert A <= 128

    def row_toeplitz(wconv, w_in, ow_out):
        # wconv: [OC, Cin, 3, 3] (OIHW).  Returns [3, w_in*Cin, ow_out*OC]:
        # per row-tap i, a width-Toeplitz matrix mapping one flattened input
        # row (w, c) to one flattened output row (ow, oc).  Left/right padding
        # is folded in (pad columns simply never appear as a source).
        oc, cin, KH, KW = wconv.shape
        wnp = np.asarray(wconv, np.float32)
        wt = np.zeros((KH, w_in * cin, ow_out * oc), np.float32)
        for i in range(KH):
            for ow in range(ow_out):
                for j in range(KW):
                    w = 2 * ow + j - 1
                    if 0 <= w < w_in:
                        wt[i, w * cin:(w + 1) * cin, ow * oc:(ow + 1) * oc] = \
                            wnp[:, :, i, j].T
        return jnp.asarray(wt)

    kp = {}
    kp["w1t"] = row_toeplitz(p["w1"], W, OW1)          # [3, W*C,       OW1*OC1]
    kp["b1"] = jnp.tile(p["b1"], OW1).reshape(1, OW1 * oc1)
    kp["w2t"] = row_toeplitz(p["w2"], OW1, OW2)        # [3, OW1*OC1,   OW2*OC2]
    kp["b2"] = jnp.tile(p["b2"], OW2).reshape(1, OW2 * oc2)

    # Dense: permute rows from torch (c, h, w) flatten order to the kernel's
    # (h, w, c) row order.  K = 512 real rows (no padding).
    w3 = p["w3"].reshape(oc2, OH2, OW2, hid)
    w3 = jnp.transpose(w3, (1, 2, 0, 3)).reshape(OH2 * OW2 * oc2, hid)
    kp["w3"] = w3
    kp["b3"] = p["b3"].reshape(1, hid)

    # Dueling head folded algebraically (exact, Q is linear in V and A):
    #   W'[:, j] = wv + wa[:, j] - mean_k wa[:, k]
    #   b'[j]    = bv + ba[j]    - mean_k ba[k]
    # Padded to 128 lanes for a lane-dense output store (extra cols are zero).
    OCP = 128
    wq = p["wv"] + p["wa"] - p["wa"].mean(axis=1, keepdims=True)   # [hid, A]
    bq = p["bv"][0] + p["ba"] - p["ba"].mean()                     # [A]
    kp["wh"] = jnp.pad(wq, ((0, 0), (0, OCP - A)))
    kp["bh"] = jnp.pad(bq, (0, OCP - A)).reshape(1, OCP)
    return kp


# ----------------------------------------------------------------------------
# QNetwork.forward
# ----------------------------------------------------------------------------
@functools.partial(jax.jit, static_argnames=("num_actions",))
def qnetwork_forward(x_nchw, kp, *, num_actions):
    B, C, H, W = x_nchw.shape
    # Single tiny (8 KiB) XLA layout op: NCHW -> [B, H, W*C] flattened rows.
    # TODO(synk): could be folded into the kernel, but an in-kernel NCHW
    # transpose would just trade one fused XLA op for an in-kernel relayout.
    xr = jnp.transpose(x_nchw, (0, 2, 3, 1)).reshape(B, H, W * C)
    return qnetwork_pallas(xr, kp, num_actions)


# ----------------------------------------------------------------------------
# Pure-JAX reference (PyTorch semantics) for correctness checking
# ----------------------------------------------------------------------------
def reference_forward(x_nchw, p):
    def conv(x, w, b):
        y = lax.conv_general_dilated(x, w, window_strides=(2, 2),
                                     padding=((1, 1), (1, 1)),
                                     dimension_numbers=("NCHW", "OIHW", "NCHW"))
        return jnp.maximum(y + b[None, :, None, None], 0.0)

    y = conv(x_nchw, p["w1"], p["b1"])
    y = conv(y, p["w2"], p["b2"])
    h = y.reshape(y.shape[0], -1)                     # torch (C, H, W) flatten
    h = jnp.maximum(h @ p["w3"] + p["b3"], 0.0)
    v = h @ p["wv"] + p["bv"]
    a = h @ p["wa"] + p["ba"]
    return v + a - a.mean(axis=-1, keepdims=True)


if __name__ == "__main__":
    B, C, H, W = 2, 4, 16, 16
    num_actions = 5

    x = jax.random.normal(jax.random.PRNGKey(0), (B, C, H, W), jnp.float32)
    params = init_params(jax.random.PRNGKey(1), C, num_actions)
    kparams = prepare_params(params, (H, W), num_actions)

    q = jax.block_until_ready(qnetwork_forward(x, kparams, num_actions=num_actions))
    q_ref = jax.block_until_ready(reference_forward(x, params))

    assert q.shape == (B, num_actions)
    assert q.dtype == jnp.float32
    assert bool(jnp.all(jnp.isfinite(q)))
    err = float(jnp.max(jnp.abs(q - q_ref)))
    assert err < 1e-4, f"max abs err {err}"
    print("KERNEL_OK")
</pallas_src>

<mosaic_0001>
module attributes {stable_mosaic.version = 11 : i64} {
  func.func @_qnet_kernel(%arg0: i32, %arg1: memref<2x16x64xf32, #tpu.memory_space<vmem>>, %arg2: memref<3x64x128xf32, #tpu.memory_space<vmem>>, %arg3: memref<1x128xf32, #tpu.memory_space<vmem>>, %arg4: memref<3x128x128xf32, #tpu.memory_space<vmem>>, %arg5: memref<1x128xf32, #tpu.memory_space<vmem>>, %arg6: memref<512x64xf32, #tpu.memory_space<vmem>>, %arg7: memref<1x64xf32, #tpu.memory_space<vmem>>, %arg8: memref<64x128xf32, #tpu.memory_space<vmem>>, %arg9: memref<1x128xf32, #tpu.memory_space<vmem>>, %arg10: memref<2x128xf32, #tpu.memory_space<vmem>>) attributes {dimension_semantics = [#tpu.dimension_semantics<arbitrary>], iteration_bounds = array<i64: 1>, scalar_prefetch = 0 : i64, scratch_operands = 0 : i64, tpu.core_type = #tpu.core_type<tc>, window_params = [{pipeline_mode = #tpu.pipeline_mode<synchronous>, transform_indices = @transform_0, window_bounds = array<i64: 2, 16, 64>}, {pipeline_mode = #tpu.pipeline_mode<synchronous>, transform_indices = @transform_1, window_bounds = array<i64: 3, 64, 128>}, {pipeline_mode = #tpu.pipeline_mode<synchronous>, transform_indices = @transform_2, window_bounds = array<i64: 1, 128>}, {pipeline_mode = #tpu.pipeline_mode<synchronous>, transform_indices = @transform_3, window_bounds = array<i64: 3, 128, 128>}, {pipeline_mode = #tpu.pipeline_mode<synchronous>, transform_indices = @transform_4, window_bounds = array<i64: 1, 128>}, {pipeline_mode = #tpu.pipeline_mode<synchronous>, transform_indices = @transform_5, window_bounds = array<i64: 512, 64>}, {pipeline_mode = #tpu.pipeline_mode<synchronous>, transform_indices = @transform_6, window_bounds = array<i64: 1, 64>}, {pipeline_mode = #tpu.pipeline_mode<synchronous>, transform_indices = @transform_7, window_bounds = array<i64: 64, 128>}, {pipeline_mode = #tpu.pipeline_mode<synchronous>, transform_indices = @transform_8, window_bounds = array<i64: 1, 128>}, {pipeline_mode = #tpu.pipeline_mode<synchronous>, transform_indices = @transform_9, window_bounds = array<i64: 2, 128>}]} {
    %c0 = arith.constant 0 : index
    %c0_0 = arith.constant 0 : index
    %c0_1 = arith.constant 0 : index
    %0 = vector.load %arg1[%c0, %c0_0, %c0_1] : memref<2x16x64xf32, #tpu.memory_space<vmem>>, vector<2x1x64xf32>
    %1 = vector.shape_cast %0 : vector<2x1x64xf32> to vector<2x64xf32>
    %c1 = arith.constant 1 : index
    %c0_2 = arith.constant 0 : index
    %c0_3 = arith.constant 0 : index
    %2 = vector.load %arg2[%c1, %c0_2, %c0_3] : memref<3x64x128xf32, #tpu.memory_space<vmem>>, vector<1x64x128xf32>
    %3 = vector.shape_cast %2 : vector<1x64x128xf32> to vector<64x128xf32>
    %cst = arith.constant dense<0.000000e+00> : vector<2x128xf32>
    %4 = tpu.matmul %1, %3, %cst {dimension_numbers = #tpu.dot_dimension_numbers<[1], [0], [0], [1], [0, 0, 1, 1], [], []>} : vector<2x64xf32>, vector<64x128xf32>, vector<2x128xf32> -> vector<2x128xf32>
    %c0_4 = arith.constant 0 : index
    %c1_5 = arith.constant 1 : index
    %c0_6 = arith.constant 0 : index
    %5 = vector.load %arg1[%c0_4, %c1_5, %c0_6] : memref<2x16x64xf32, #tpu.memory_space<vmem>>, vector<2x1x64xf32>
    %6 = vector.shape_cast %5 : vector<2x1x64xf32> to vector<2x64xf32>
    %c2 = arith.constant 2 : index
    %c0_7 = arith.constant 0 : index
    %c0_8 = arith.constant 0 : index
    %7 = vector.load %arg2[%c2, %c0_7, %c0_8] : memref<3x64x128xf32, #tpu.memory_space<vmem>>, vector<1x64x128xf32>
    %8 = vector.shape_cast %7 : vector<1x64x128xf32> to vector<64x128xf32>
    %cst_9 = arith.constant dense<0.000000e+00> : vector<2x128xf32>
    %9 = tpu.matmul %6, %8, %cst_9 {dimension_numbers = #tpu.dot_dimension_numbers<[1], [0], [0], [1], [0, 0, 1, 1], [], []>} : vector<2x64xf32>, vector<64x128xf32>, vector<2x128xf32> -> vector<2x128xf32>
    %10 = arith.addf %4, %9 : vector<2x128xf32>
    %c0_10 = arith.constant 0 : index
    %c0_11 = arith.constant 0 : index
    %11 = vector.load %arg3[%c0_10, %c0_11] : memref<1x128xf32, #tpu.memory_space<vmem>>, vector<1x128xf32>
    %12 = vector.broadcast %11 : vector<1x128xf32> to vector<2x128xf32>
    %13 = arith.addf %10, %12 : vector<2x128xf32>
    %cst_12 = arith.constant 0.000000e+00 : f32
    %14 = vector.broadcast %cst_12 : f32 to vector<2x128xf32>
    %15 = arith.maximumf %13, %14 : vector<2x128xf32>
    %c0_13 = arith.constant 0 : index
    %c1_14 = arith.constant 1 : index
    %c0_15 = arith.constant 0 : index
    %16 = vector.load %arg1[%c0_13, %c1_14, %c0_15] : memref<2x16x64xf32, #tpu.memory_space<vmem>>, vector<2x1x64xf32>
    %17 = vector.shape_cast %16 : vector<2x1x64xf32> to vector<2x64xf32>
    %c0_16 = arith.constant 0 : index
    %c0_17 = arith.constant 0 : index
    %c0_18 = arith.constant 0 : index
    %18 = vector.load %arg2[%c0_16, %c0_17, %c0_18] : memref<3x64x128xf32, #tpu.memory_space<vmem>>, vector<1x64x128xf32>
    %19 = vector.shape_cast %18 : vector<1x64x128xf32> to vector<64x128xf32>
    %cst_19 = arith.constant dense<0.000000e+00> : vector<2x128xf32>
    %20 = tpu.matmul %17, %19, %cst_19 {dimension_numbers = #tpu.dot_dimension_numbers<[1], [0], [0], [1], [0, 0, 1, 1], [], []>} : vector<2x64xf32>, vector<64x128xf32>, vector<2x128xf32> -> vector<2x128xf32>
    %c0_20 = arith.constant 0 : index
    %c2_21 = arith.constant 2 : index
    %c0_22 = arith.constant 0 : index
    %21 = vector.load %arg1[%c0_20, %c2_21, %c0_22] : memref<2x16x64xf32, #tpu.memory_space<vmem>>, vector<2x1x64xf32>
    %22 = vector.shape_cast %21 : vector<2x1x64xf32> to vector<2x64xf32>
    %c1_23 = arith.constant 1 : index
    %c0_24 = arith.constant 0 : index
    %c0_25 = arith.constant 0 : index
    %23 = vector.load %arg2[%c1_23, %c0_24, %c0_25] : memref<3x64x128xf32, #tpu.memory_space<vmem>>, vector<1x64x128xf32>
    %24 = vector.shape_cast %23 : vector<1x64x128xf32> to vector<64x128xf32>
    %cst_26 = arith.constant dense<0.000000e+00> : vector<2x128xf32>
    %25 = tpu.matmul %22, %24, %cst_26 {dimension_numbers = #tpu.dot_dimension_numbers<[1], [0], [0], [1], [0, 0, 1, 1], [], []>} : vector<2x64xf32>, vector<64x128xf32>, vector<2x128xf32> -> vector<2x128xf32>
    %26 = arith.addf %20, %25 : vector<2x128xf32>
    %c0_27 = arith.constant 0 : index
    %c3 = arith.constant 3 : index
    %c0_28 = arith.constant 0 : index
    %27 = vector.load %arg1[%c0_27, %c3, %c0_28] : memref<2x16x64xf32, #tpu.memory_space<vmem>>, vector<2x1x64xf32>
    %28 = vector.shape_cast %27 : vector<2x1x64xf32> to vector<2x64xf32>
    %c2_29 = arith.constant 2 : index
    %c0_30 = arith.constant 0 : index
    %c0_31 = arith.constant 0 : index
    %29 = vector.load %arg2[%c2_29, %c0_30, %c0_31] : memref<3x64x128xf32, #tpu.memory_space<vmem>>, vector<1x64x128xf32>
    %30 = vector.shape_cast %29 : vector<1x64x128xf32> to vector<64x128xf32>
    %cst_32 = arith.constant dense<0.000000e+00> : vector<2x128xf32>
    %31 = tpu.matmul %28, %30, %cst_32 {dimension_numbers = #tpu.dot_dimension_numbers<[1], [0], [0], [1], [0, 0, 1, 1], [], []>} : vector<2x64xf32>, vector<64x128xf32>, vector<2x128xf32> -> vector<2x128xf32>
    %32 = arith.addf %26, %31 : vector<2x128xf32>
    %c0_33 = arith.constant 0 : index
    %c0_34 = arith.constant 0 : index
    %33 = vector.load %arg3[%c0_33, %c0_34] : memref<1x128xf32, #tpu.memory_space<vmem>>, vector<1x128xf32>
    %34 = vector.broadcast %33 : vector<1x128xf32> to vector<2x128xf32>
    %35 = arith.addf %32, %34 : vector<2x128xf32>
    %cst_35 = arith.constant 0.000000e+00 : f32
    %36 = vector.broadcast %cst_35 : f32 to vector<2x128xf32>
    %37 = arith.maximumf %35, %36 : vector<2x128xf32>
    %c0_36 = arith.constant 0 : index
    %c3_37 = arith.constant 3 : index
    %c0_38 = arith.constant 0 : index
    %38 = vector.load %arg1[%c0_36, %c3_37, %c0_38] : memref<2x16x64xf32, #tpu.memory_space<vmem>>, vector<2x1x64xf32>
    %39 = vector.shape_cast %38 : vector<2x1x64xf32> to vector<2x64xf32>
    %c0_39 = arith.constant 0 : index
    %c0_40 = arith.constant 0 : index
    %c0_41 = arith.constant 0 : index
    %40 = vector.load %arg2[%c0_39, %c0_40, %c0_41] : memref<3x64x128xf32, #tpu.memory_space<vmem>>, vector<1x64x128xf32>
    %41 = vector.shape_cast %40 : vector<1x64x128xf32> to vector<64x128xf32>
    %cst_42 = arith.constant dense<0.000000e+00> : vector<2x128xf32>
    %42 = tpu.matmul %39, %41, %cst_42 {dimension_numbers = #tpu.dot_dimension_numbers<[1], [0], [0], [1], [0, 0, 1, 1], [], []>} : vector<2x64xf32>, vector<64x128xf32>, vector<2x128xf32> -> vector<2x128xf32>
    %c0_43 = arith.constant 0 : index
    %c4 = arith.constant 4 : index
    %c0_44 = arith.constant 0 : index
    %43 = vector.load %arg1[%c0_43, %c4, %c0_44] : memref<2x16x64xf32, #tpu.memory_space<vmem>>, vector<2x1x64xf32>
    %44 = vector.shape_cast %43 : vector<2x1x64xf32> to vector<2x64xf32>
    %c1_45 = arith.constant 1 : index
    %c0_46 = arith.constant 0 : index
    %c0_47 = arith.constant 0 : index
    %45 = vector.load %arg2[%c1_45, %c0_46, %c0_47] : memref<3x64x128xf32, #tpu.memory_space<vmem>>, vector<1x64x128xf32>
    %46 = vector.shape_cast %45 : vector<1x64x128xf32> to vector<64x128xf32>
    %cst_48 = arith.constant dense<0.000000e+00> : vector<2x128xf32>
    %47 = tpu.matmul %44, %46, %cst_48 {dimension_numbers = #tpu.dot_dimension_numbers<[1], [0], [0], [1], [0, 0, 1, 1], [], []>} : vector<2x64xf32>, vector<64x128xf32>, vector<2x128xf32> -> vector<2x128xf32>
    %48 = arith.addf %42, %47 : vector<2x128xf32>
    %c0_49 = arith.constant 0 : index
    %c5 = arith.constant 5 : index
    %c0_50 = arith.constant 0 : index
    %49 = vector.load %arg1[%c0_49, %c5, %c0_50] : memref<2x16x64xf32, #tpu.memory_space<vmem>>, vector<2x1x64xf32>
    %50 = vector.shape_cast %49 : vector<2x1x64xf32> to vector<2x64xf32>
    %c2_51 = arith.constant 2 : index
    %c0_52 = arith.constant 0 : index
    %c0_53 = arith.constant 0 : index
    %51 = vector.load %arg2[%c2_51, %c0_52, %c0_53] : memref<3x64x128xf32, #tpu.memory_space<vmem>>, vector<1x64x128xf32>
    %52 = vector.shape_cast %51 : vector<1x64x128xf32> to vector<64x128xf32>
    %cst_54 = arith.constant dense<0.000000e+00> : vector<2x128xf32>
    %53 = tpu.matmul %50, %52, %cst_54 {dimension_numbers = #tpu.dot_dimension_numbers<[1], [0], [0], [1], [0, 0, 1, 1], [], []>} : vector<2x64xf32>, vector<64x128xf32>, vector<2x128xf32> -> vector<2x128xf32>
    %54 = arith.addf %48, %53 : vector<2x128xf32>
    %c0_55 = arith.constant 0 : index
    %c0_56 = arith.constant 0 : index
    %55 = vector.load %arg3[%c0_55, %c0_56] : memref<1x128xf32, #tpu.memory_space<vmem>>, vector<1x128xf32>
    %56 = vector.broadcast %55 : vector<1x128xf32> to vector<2x128xf32>
    %57 = arith.addf %54, %56 : vector<2x128xf32>
    %cst_57 = arith.constant 0.000000e+00 : f32
    %58 = vector.broadcast %cst_57 : f32 to vector<2x128xf32>
    %59 = arith.maximumf %57, %58 : vector<2x128xf32>
    %c0_58 = arith.constant 0 : index
    %c5_59 = arith.constant 5 : index
    %c0_60 = arith.constant 0 : index
    %60 = vector.load %arg1[%c0_58, %c5_59, %c0_60] : memref<2x16x64xf32, #tpu.memory_space<vmem>>, vector<2x1x64xf32>
    %61 = vector.shape_cast %60 : vector<2x1x64xf32> to vector<2x64xf32>
    %c0_61 = arith.constant 0 : index
    %c0_62 = arith.constant 0 : index
    %c0_63 = arith.constant 0 : index
    %62 = vector.load %arg2[%c0_61, %c0_62, %c0_63] : memref<3x64x128xf32, #tpu.memory_space<vmem>>, vector<1x64x128xf32>
    %63 = vector.shape_cast %62 : vector<1x64x128xf32> to vector<64x128xf32>
    %cst_64 = arith.constant dense<0.000000e+00> : vector<2x128xf32>
    %64 = tpu.matmul %61, %63, %cst_64 {dimension_numbers = #tpu.dot_dimension_numbers<[1], [0], [0], [1], [0, 0, 1, 1], [], []>} : vector<2x64xf32>, vector<64x128xf32>, vector<2x128xf32> -> vector<2x128xf32>
    %c0_65 = arith.constant 0 : index
    %c6 = arith.constant 6 : index
    %c0_66 = arith.constant 0 : index
    %65 = vector.load %arg1[%c0_65, %c6, %c0_66] : memref<2x16x64xf32, #tpu.memory_space<vmem>>, vector<2x1x64xf32>
    %66 = vector.shape_cast %65 : vector<2x1x64xf32> to vector<2x64xf32>
    %c1_67 = arith.constant 1 : index
    %c0_68 = arith.constant 0 : index
    %c0_69 = arith.constant 0 : index
    %67 = vector.load %arg2[%c1_67, %c0_68, %c0_69] : memref<3x64x128xf32, #tpu.memory_space<vmem>>, vector<1x64x128xf32>
    %68 = vector.shape_cast %67 : vector<1x64x128xf32> to vector<64x128xf32>
    %cst_70 = arith.constant dense<0.000000e+00> : vector<2x128xf32>
    %69 = tpu.matmul %66, %68, %cst_70 {dimension_numbers = #tpu.dot_dimension_numbers<[1], [0], [0], [1], [0, 0, 1, 1], [], []>} : vector<2x64xf32>, vector<64x128xf32>, vector<2x128xf32> -> vector<2x128xf32>
    %70 = arith.addf %64, %69 : vector<2x128xf32>
    %c0_71 = arith.constant 0 : index
    %c7 = arith.constant 7 : index
    %c0_72 = arith.constant 0 : index
    %71 = vector.load %arg1[%c0_71, %c7, %c0_72] : memref<2x16x64xf32, #tpu.memory_space<vmem>>, vector<2x1x64xf32>
    %72 = vector.shape_cast %71 : vector<2x1x64xf32> to vector<2x64xf32>
    %c2_73 = arith.constant 2 : index
    %c0_74 = arith.constant 0 : index
    %c0_75 = arith.constant 0 : index
    %73 = vector.load %arg2[%c2_73, %c0_74, %c0_75] : memref<3x64x128xf32, #tpu.memory_space<vmem>>, vector<1x64x128xf32>
    %74 = vector.shape_cast %73 : vector<1x64x128xf32> to vector<64x128xf32>
    %cst_76 = arith.constant dense<0.000000e+00> : vector<2x128xf32>
    %75 = tpu.matmul %72, %74, %cst_76 {dimension_numbers = #tpu.dot_dimension_numbers<[1], [0], [0], [1], [0, 0, 1, 1], [], []>} : vector<2x64xf32>, vector<64x128xf32>, vector<2x128xf32> -> vector<2x128xf32>
    %76 = arith.addf %70, %75 : vector<2x128xf32>
    %c0_77 = arith.constant 0 : index
    %c0_78 = arith.constant 0 : index
    %77 = vector.load %arg3[%c0_77, %c0_78] : memref<1x128xf32, #tpu.memory_space<vmem>>, vector<1x128xf32>
    %78 = vector.broadcast %77 : vector<1x128xf32> to vector<2x128xf32>
    %79 = arith.addf %76, %78 : vector<2x128xf32>
    %cst_79 = arith.constant 0.000000e+00 : f32
    %80 = vector.broadcast %cst_79 : f32 to vector<2x128xf32>
    %81 = arith.maximumf %79, %80 : vector<2x128xf32>
    %c0_80 = arith.constant 0 : index
    %c7_81 = arith.constant 7 : index
    %c0_82 = arith.constant 0 : index
    %82 = vector.load %arg1[%c0_80, %c7_81, %c0_82] : memref<2x16x64xf32, #tpu.memory_space<vmem>>, vector<2x1x64xf32>
    %83 = vector.shape_cast %82 : vector<2x1x64xf32> to vector<2x64xf32>
    %c0_83 = arith.constant 0 : index
    %c0_84 = arith.constant 0 : index
    %c0_85 = arith.constant 0 : index
    %84 = vector.load %arg2[%c0_83, %c0_84, %c0_85] : memref<3x64x128xf32, #tpu.memory_space<vmem>>, vector<1x64x128xf32>
    %85 = vector.shape_cast %84 : vector<1x64x128xf32> to vector<64x128xf32>
    %cst_86 = arith.constant dense<0.000000e+00> : vector<2x128xf32>
    %86 = tpu.matmul %83, %85, %cst_86 {dimension_numbers = #tpu.dot_dimension_numbers<[1], [0], [0], [1], [0, 0, 1, 1], [], []>} : vector<2x64xf32>, vector<64x128xf32>, vector<2x128xf32> -> vector<2x128xf32>
    %c0_87 = arith.constant 0 : index
    %c8 = arith.constant 8 : index
    %c0_88 = arith.constant 0 : index
    %87 = vector.load %arg1[%c0_87, %c8, %c0_88] : memref<2x16x64xf32, #tpu.memory_space<vmem>>, vector<2x1x64xf32>
    %88 = vector.shape_cast %87 : vector<2x1x64xf32> to vector<2x64xf32>
    %c1_89 = arith.constant 1 : index
    %c0_90 = arith.constant 0 : index
    %c0_91 = arith.constant 0 : index
    %89 = vector.load %arg2[%c1_89, %c0_90, %c0_91] : memref<3x64x128xf32, #tpu.memory_space<vmem>>, vector<1x64x128xf32>
    %90 = vector.shape_cast %89 : vector<1x64x128xf32> to vector<64x128xf32>
    %cst_92 = arith.constant dense<0.000000e+00> : vector<2x128xf32>
    %91 = tpu.matmul %88, %90, %cst_92 {dimension_numbers = #tpu.dot_dimension_numbers<[1], [0], [0], [1], [0, 0, 1, 1], [], []>} : vector<2x64xf32>, vector<64x128xf32>, vector<2x128xf32> -> vector<2x128xf32>
    %92 = arith.addf %86, %91 : vector<2x128xf32>
    %c0_93 = arith.constant 0 : index
    %c9 = arith.constant 9 : index
    %c0_94 = arith.constant 0 : index
    %93 = vector.load %arg1[%c0_93, %c9, %c0_94] : memref<2x16x64xf32, #tpu.memory_space<vmem>>, vector<2x1x64xf32>
    %94 = vector.shape_cast %93 : vector<2x1x64xf32> to vector<2x64xf32>
    %c2_95 = arith.constant 2 : index
    %c0_96 = arith.constant 0 : index
    %c0_97 = arith.constant 0 : index
    %95 = vector.load %arg2[%c2_95, %c0_96, %c0_97] : memref<3x64x128xf32, #tpu.memory_space<vmem>>, vector<1x64x128xf32>
    %96 = vector.shape_cast %95 : vector<1x64x128xf32> to vector<64x128xf32>
    %cst_98 = arith.constant dense<0.000000e+00> : vector<2x128xf32>
    %97 = tpu.matmul %94, %96, %cst_98 {dimension_numbers = #tpu.dot_dimension_numbers<[1], [0], [0], [1], [0, 0, 1, 1], [], []>} : vector<2x64xf32>, vector<64x128xf32>, vector<2x128xf32> -> vector<2x128xf32>
    %98 = arith.addf %92, %97 : vector<2x128xf32>
    %c0_99 = arith.constant 0 : index
    %c0_100 = arith.constant 0 : index
    %99 = vector.load %arg3[%c0_99, %c0_100] : memref<1x128xf32, #tpu.memory_space<vmem>>, vector<1x128xf32>
    %100 = vector.broadcast %99 : vector<1x128xf32> to vector<2x128xf32>
    %101 = arith.addf %98, %100 : vector<2x128xf32>
    %cst_101 = arith.constant 0.000000e+00 : f32
    %102 = vector.broadcast %cst_101 : f32 to vector<2x128xf32>
    %103 = arith.maximumf %101, %102 : vector<2x128xf32>
    %c0_102 = arith.constant 0 : index
    %c9_103 = arith.constant 9 : index
    %c0_104 = arith.constant 0 : index
    %104 = vector.load %arg1[%c0_102, %c9_103, %c0_104] : memref<2x16x64xf32, #tpu.memory_space<vmem>>, vector<2x1x64xf32>
    %105 = vector.shape_cast %104 : vector<2x1x64xf32> to vector<2x64xf32>
    %c0_105 = arith.constant 0 : index
    %c0_106 = arith.constant 0 : index
    %c0_107 = arith.constant 0 : index
    %106 = vector.load %arg2[%c0_105, %c0_106, %c0_107] : memref<3x64x128xf32, #tpu.memory_space<vmem>>, vector<1x64x128xf32>
    %107 = vector.shape_cast %106 : vector<1x64x128xf32> to vector<64x128xf32>
    %cst_108 = arith.constant dense<0.000000e+00> : vector<2x128xf32>
    %108 = tpu.matmul %105, %107, %cst_108 {dimension_numbers = #tpu.dot_dimension_numbers<[1], [0], [0], [1], [0, 0, 1, 1], [], []>} : vector<2x64xf32>, vector<64x128xf32>, vector<2x128xf32> -> vector<2x128xf32>
    %c0_109 = arith.constant 0 : index
    %c10 = arith.constant 10 : index
    %c0_110 = arith.constant 0 : index
    %109 = vector.load %arg1[%c0_109, %c10, %c0_110] : memref<2x16x64xf32, #tpu.memory_space<vmem>>, vector<2x1x64xf32>
    %110 = vector.shape_cast %109 : vector<2x1x64xf32> to vector<2x64xf32>
    %c1_111 = arith.constant 1 : index
    %c0_112 = arith.constant 0 : index
    %c0_113 = arith.constant 0 : index
    %111 = vector.load %arg2[%c1_111, %c0_112, %c0_113] : memref<3x64x128xf32, #tpu.memory_space<vmem>>, vector<1x64x128xf32>
    %112 = vector.shape_cast %111 : vector<1x64x128xf32> to vector<64x128xf32>
    %cst_114 = arith.constant dense<0.000000e+00> : vector<2x128xf32>
    %113 = tpu.matmul %110, %112, %cst_114 {dimension_numbers = #tpu.dot_dimension_numbers<[1], [0], [0], [1], [0, 0, 1, 1], [], []>} : vector<2x64xf32>, vector<64x128xf32>, vector<2x128xf32> -> vector<2x128xf32>
    %114 = arith.addf %108, %113 : vector<2x128xf32>
    %c0_115 = arith.constant 0 : index
    %c11 = arith.constant 11 : index
    %c0_116 = arith.constant 0 : index
    %115 = vector.load %arg1[%c0_115, %c11, %c0_116] : memref<2x16x64xf32, #tpu.memory_space<vmem>>, vector<2x1x64xf32>
    %116 = vector.shape_cast %115 : vector<2x1x64xf32> to vector<2x64xf32>
    %c2_117 = arith.constant 2 : index
    %c0_118 = arith.constant 0 : index
    %c0_119 = arith.constant 0 : index
    %117 = vector.load %arg2[%c2_117, %c0_118, %c0_119] : memref<3x64x128xf32, #tpu.memory_space<vmem>>, vector<1x64x128xf32>
    %118 = vector.shape_cast %117 : vector<1x64x128xf32> to vector<64x128xf32>
    %cst_120 = arith.constant dense<0.000000e+00> : vector<2x128xf32>
    %119 = tpu.matmul %116, %118, %cst_120 {dimension_numbers = #tpu.dot_dimension_numbers<[1], [0], [0], [1], [0, 0, 1, 1], [], []>} : vector<2x64xf32>, vector<64x128xf32>, vector<2x128xf32> -> vector<2x128xf32>
    %120 = arith.addf %114, %119 : vector<2x128xf32>
    %c0_121 = arith.constant 0 : index
    %c0_122 = arith.constant 0 : index
    %121 = vector.load %arg3[%c0_121, %c0_122] : memref<1x128xf32, #tpu.memory_space<vmem>>, vector<1x128xf32>
    %122 = vector.broadcast %121 : vector<1x128xf32> to vector<2x128xf32>
    %123 = arith.addf %120, %122 : vector<2x128xf32>
    %cst_123 = arith.constant 0.000000e+00 : f32
    %124 = vector.broadcast %cst_123 : f32 to vector<2x128xf32>
    %125 = arith.maximumf %123, %124 : vector<2x128xf32>
    %c0_124 = arith.constant 0 : index
    %c11_125 = arith.constant 11 : index
    %c0_126 = arith.constant 0 : index
    %126 = vector.load %arg1[%c0_124, %c11_125, %c0_126] : memref<2x16x64xf32, #tpu.memory_space<vmem>>, vector<2x1x64xf32>
    %127 = vector.shape_cast %126 : vector<2x1x64xf32> to vector<2x64xf32>
    %c0_127 = arith.constant 0 : index
    %c0_128 = arith.constant 0 : index
    %c0_129 = arith.constant 0 : index
    %128 = vector.load %arg2[%c0_127, %c0_128, %c0_129] : memref<3x64x128xf32, #tpu.memory_space<vmem>>, vector<1x64x128xf32>
    %129 = vector.shape_cast %128 : vector<1x64x128xf32> to vector<64x128xf32>
    %cst_130 = arith.constant dense<0.000000e+00> : vector<2x128xf32>
    %130 = tpu.matmul %127, %129, %cst_130 {dimension_numbers = #tpu.dot_dimension_numbers<[1], [0], [0], [1], [0, 0, 1, 1], [], []>} : vector<2x64xf32>, vector<64x128xf32>, vector<2x128xf32> -> vector<2x128xf32>
    %c0_131 = arith.constant 0 : index
    %c12 = arith.constant 12 : index
    %c0_132 = arith.constant 0 : index
    %131 = vector.load %arg1[%c0_131, %c12, %c0_132] : memref<2x16x64xf32, #tpu.memory_space<vmem>>, vector<2x1x64xf32>
    %132 = vector.shape_cast %131 : vector<2x1x64xf32> to vector<2x64xf32>
    %c1_133 = arith.constant 1 : index
    %c0_134 = arith.constant 0 : index
    %c0_135 = arith.constant 0 : index
    %133 = vector.load %arg2[%c1_133, %c0_134, %c0_135] : memref<3x64x128xf32, #tpu.memory_space<vmem>>, vector<1x64x128xf32>
    %134 = vector.shape_cast %133 : vector<1x64x128xf32> to vector<64x128xf32>
    %cst_136 = arith.constant dense<0.000000e+00> : vector<2x128xf32>
    %135 = tpu.matmul %132, %134, %cst_136 {dimension_numbers = #tpu.dot_dimension_numbers<[1], [0], [0], [1], [0, 0, 1, 1], [], []>} : vector<2x64xf32>, vector<64x128xf32>, vector<2x128xf32> -> vector<2x128xf32>
    %136 = arith.addf %130, %135 : vector<2x128xf32>
    %c0_137 = arith.constant 0 : index
    %c13 = arith.constant 13 : index
    %c0_138 = arith.constant 0 : index
    %137 = vector.load %arg1[%c0_137, %c13, %c0_138] : memref<2x16x64xf32, #tpu.memory_space<vmem>>, vector<2x1x64xf32>
    %138 = vector.shape_cast %137 : vector<2x1x64xf32> to vector<2x64xf32>
    %c2_139 = arith.constant 2 : index
    %c0_140 = arith.constant 0 : index
    %c0_141 = arith.constant 0 : index
    %139 = vector.load %arg2[%c2_139, %c0_140, %c0_141] : memref<3x64x128xf32, #tpu.memory_space<vmem>>, vector<1x64x128xf32>
    %140 = vector.shape_cast %139 : vector<1x64x128xf32> to vector<64x128xf32>
    %cst_142 = arith.constant dense<0.000000e+00> : vector<2x128xf32>
    %141 = tpu.matmul %138, %140, %cst_142 {dimension_numbers = #tpu.dot_dimension_numbers<[1], [0], [0], [1], [0, 0, 1, 1], [], []>} : vector<2x64xf32>, vector<64x128xf32>, vector<2x128xf32> -> vector<2x128xf32>
    %142 = arith.addf %136, %141 : vector<2x128xf32>
    %c0_143 = arith.constant 0 : index
    %c0_144 = arith.constant 0 : index
    %143 = vector.load %arg3[%c0_143, %c0_144] : memref<1x128xf32, #tpu.memory_space<vmem>>, vector<1x128xf32>
    %144 = vector.broadcast %143 : vector<1x128xf32> to vector<2x128xf32>
    %145 = arith.addf %142, %144 : vector<2x128xf32>
    %cst_145 = arith.constant 0.000000e+00 : f32
    %146 = vector.broadcast %cst_145 : f32 to vector<2x128xf32>
    %147 = arith.maximumf %145, %146 : vector<2x128xf32>
    %c0_146 = arith.constant 0 : index
    %c13_147 = arith.constant 13 : index
    %c0_148 = arith.constant 0 : index
    %148 = vector.load %arg1[%c0_146, %c13_147, %c0_148] : memref<2x16x64xf32, #tpu.memory_space<vmem>>, vector<2x1x64xf32>
    %149 = vector.shape_cast %148 : vector<2x1x64xf32> to vector<2x64xf32>
    %c0_149 = arith.constant 0 : index
    %c0_150 = arith.constant 0 : index
    %c0_151 = arith.constant 0 : index
    %150 = vector.load %arg2[%c0_149, %c0_150, %c0_151] : memref<3x64x128xf32, #tpu.memory_space<vmem>>, vector<1x64x128xf32>
    %151 = vector.shape_cast %150 : vector<1x64x128xf32> to vector<64x128xf32>
    %cst_152 = arith.constant dense<0.000000e+00> : vector<2x128xf32>
    %152 = tpu.matmul %149, %151, %cst_152 {dimension_numbers = #tpu.dot_dimension_numbers<[1], [0], [0], [1], [0, 0, 1, 1], [], []>} : vector<2x64xf32>, vector<64x128xf32>, vector<2x128xf32> -> vector<2x128xf32>
    %c0_153 = arith.constant 0 : index
    %c14 = arith.constant 14 : index
    %c0_154 = arith.constant 0 : index
    %153 = vector.load %arg1[%c0_153, %c14, %c0_154] : memref<2x16x64xf32, #tpu.memory_space<vmem>>, vector<2x1x64xf32>
    %154 = vector.shape_cast %153 : vector<2x1x64xf32> to vector<2x64xf32>
    %c1_155 = arith.constant 1 : index
    %c0_156 = arith.constant 0 : index
    %c0_157 = arith.constant 0 : index
    %155 = vector.load %arg2[%c1_155, %c0_156, %c0_157] : memref<3x64x128xf32, #tpu.memory_space<vmem>>, vector<1x64x128xf32>
    %156 = vector.shape_cast %155 : vector<1x64x128xf32> to vector<64x128xf32>
    %cst_158 = arith.constant dense<0.000000e+00> : vector<2x128xf32>
    %157 = tpu.matmul %154, %156, %cst_158 {dimension_numbers = #tpu.dot_dimension_numbers<[1], [0], [0], [1], [0, 0, 1, 1], [], []>} : vector<2x64xf32>, vector<64x128xf32>, vector<2x128xf32> -> vector<2x128xf32>
    %158 = arith.addf %152, %157 : vector<2x128xf32>
    %c0_159 = arith.constant 0 : index
    %c15 = arith.constant 15 : index
    %c0_160 = arith.constant 0 : index
    %159 = vector.load %arg1[%c0_159, %c15, %c0_160] : memref<2x16x64xf32, #tpu.memory_space<vmem>>, vector<2x1x64xf32>
    %160 = vector.shape_cast %159 : vector<2x1x64xf32> to vector<2x64xf32>
    %c2_161 = arith.constant 2 : index
    %c0_162 = arith.constant 0 : index
    %c0_163 = arith.constant 0 : index
    %161 = vector.load %arg2[%c2_161, %c0_162, %c0_163] : memref<3x64x128xf32, #tpu.memory_space<vmem>>, vector<1x64x128xf32>
    %162 = vector.shape_cast %161 : vector<1x64x128xf32> to vector<64x128xf32>
    %cst_164 = arith.constant dense<0.000000e+00> : vector<2x128xf32>
    %163 = tpu.matmul %160, %162, %cst_164 {dimension_numbers = #tpu.dot_dimension_numbers<[1], [0], [0], [1], [0, 0, 1, 1], [], []>} : vector<2x64xf32>, vector<64x128xf32>, vector<2x128xf32> -> vector<2x128xf32>
    %164 = arith.addf %158, %163 : vector<2x128xf32>
    %c0_165 = arith.constant 0 : index
    %c0_166 = arith.constant 0 : index
    %165 = vector.load %arg3[%c0_165, %c0_166] : memref<1x128xf32, #tpu.memory_space<vmem>>, vector<1x128xf32>
    %166 = vector.broadcast %165 : vector<1x128xf32> to vector<2x128xf32>
    %167 = arith.addf %164, %166 : vector<2x128xf32>
    %cst_167 = arith.constant 0.000000e+00 : f32
    %168 = vector.broadcast %cst_167 : f32 to vector<2x128xf32>
    %169 = arith.maximumf %167, %168 : vector<2x128xf32>
    %c1_168 = arith.constant 1 : index
    %c0_169 = arith.constant 0 : index
    %c0_170 = arith.constant 0 : index
    %170 = vector.load %arg4[%c1_168, %c0_169, %c0_170] : memref<3x128x128xf32, #tpu.memory_space<vmem>>, vector<1x128x128xf32>
    %171 = vector.shape_cast %170 : vector<1x128x128xf32> to vector<128x128xf32>
    %cst_171 = arith.constant dense<0.000000e+00> : vector<2x128xf32>
    %172 = tpu.matmul %15, %171, %cst_171 {dimension_numbers = #tpu.dot_dimension_numbers<[1], [0], [0], [1], [0, 0, 1, 1], [], []>} : vector<2x128xf32>, vector<128x128xf32>, vector<2x128xf32> -> vector<2x128xf32>
    %c2_172 = arith.constant 2 : index
    %c0_173 = arith.constant 0 : index
    %c0_174 = arith.constant 0 : index
    %173 = vector.load %arg4[%c2_172, %c0_173, %c0_174] : memref<3x128x128xf32, #tpu.memory_space<vmem>>, vector<1x128x128xf32>
    %174 = vector.shape_cast %173 : vector<1x128x128xf32> to vector<128x128xf32>
    %cst_175 = arith.constant dense<0.000000e+00> : vector<2x128xf32>
    %175 = tpu.matmul %37, %174, %cst_175 {dimension_numbers = #tpu.dot_dimension_numbers<[1], [0], [0], [1], [0, 0, 1, 1], [], []>} : vector<2x128xf32>, vector<128x128xf32>, vector<2x128xf32> -> vector<2x128xf32>
    %176 = arith.addf %172, %175 : vector<2x128xf32>
    %c0_176 = arith.constant 0 : index
    %c0_177 = arith.constant 0 : index
    %177 = vector.load %arg5[%c0_176, %c0_177] : memref<1x128xf32, #tpu.memory_space<vmem>>, vector<1x128xf32>
    %178 = vector.broadcast %177 : vector<1x128xf32> to vector<2x128xf32>
    %179 = arith.addf %176, %178 : vector<2x128xf32>
    %cst_178 = arith.constant 0.000000e+00 : f32
    %180 = vector.broadcast %cst_178 : f32 to vector<2x128xf32>
    %181 = arith.maximumf %179, %180 : vector<2x128xf32>
    %c0_179 = arith.constant 0 : index
    %c0_180 = arith.constant 0 : index
    %182 = vector.load %arg6[%c0_179, %c0_180] : memref<512x64xf32, #tpu.memory_space<vmem>>, vector<128x64xf32>
    %cst_181 = arith.constant dense<0.000000e+00> : vector<2x64xf32>
    %183 = tpu.matmul %181, %182, %cst_181 {dimension_numbers = #tpu.dot_dimension_numbers<[1], [0], [0], [1], [0, 0, 1, 1], [], []>} : vector<2x128xf32>, vector<128x64xf32>, vector<2x64xf32> -> vector<2x64xf32>
    %c0_182 = arith.constant 0 : index
    %c0_183 = arith.constant 0 : index
    %c0_184 = arith.constant 0 : index
    %184 = vector.load %arg4[%c0_182, %c0_183, %c0_184] : memref<3x128x128xf32, #tpu.memory_space<vmem>>, vector<1x128x128xf32>
    %185 = vector.shape_cast %184 : vector<1x128x128xf32> to vector<128x128xf32>
    %cst_185 = arith.constant dense<0.000000e+00> : vector<2x128xf32>
    %186 = tpu.matmul %37, %185, %cst_185 {dimension_numbers = #tpu.dot_dimension_numbers<[1], [0], [0], [1], [0, 0, 1, 1], [], []>} : vector<2x128xf32>, vector<128x128xf32>, vector<2x128xf32> -> vector<2x128xf32>
    %c1_186 = arith.constant 1 : index
    %c0_187 = arith.constant 0 : index
    %c0_188 = arith.constant 0 : index
    %187 = vector.load %arg4[%c1_186, %c0_187, %c0_188] : memref<3x128x128xf32, #tpu.memory_space<vmem>>, vector<1x128x128xf32>
    %188 = vector.shape_cast %187 : vector<1x128x128xf32> to vector<128x128xf32>
    %cst_189 = arith.constant dense<0.000000e+00> : vector<2x128xf32>
    %189 = tpu.matmul %59, %188, %cst_189 {dimension_numbers = #tpu.dot_dimension_numbers<[1], [0], [0], [1], [0, 0, 1, 1], [], []>} : vector<2x128xf32>, vector<128x128xf32>, vector<2x128xf32> -> vector<2x128xf32>
    %190 = arith.addf %186, %189 : vector<2x128xf32>
    %c2_190 = arith.constant 2 : index
    %c0_191 = arith.constant 0 : index
    %c0_192 = arith.constant 0 : index
    %191 = vector.load %arg4[%c2_190, %c0_191, %c0_192] : memref<3x128x128xf32, #tpu.memory_space<vmem>>, vector<1x128x128xf32>
    %192 = vector.shape_cast %191 : vector<1x128x128xf32> to vector<128x128xf32>
    %cst_193 = arith.constant dense<0.000000e+00> : vector<2x128xf32>
    %193 = tpu.matmul %81, %192, %cst_193 {dimension_numbers = #tpu.dot_dimension_numbers<[1], [0], [0], [1], [0, 0, 1, 1], [], []>} : vector<2x128xf32>, vector<128x128xf32>, vector<2x128xf32> -> vector<2x128xf32>
    %194 = arith.addf %190, %193 : vector<2x128xf32>
    %c0_194 = arith.constant 0 : index
    %c0_195 = arith.constant 0 : index
    %195 = vector.load %arg5[%c0_194, %c0_195] : memref<1x128xf32, #tpu.memory_space<vmem>>, vector<1x128xf32>
    %196 = vector.broadcast %195 : vector<1x128xf32> to vector<2x128xf32>
    %197 = arith.addf %194, %196 : vector<2x128xf32>
    %cst_196 = arith.constant 0.000000e+00 : f32
    %198 = vector.broadcast %cst_196 : f32 to vector<2x128xf32>
    %199 = arith.maximumf %197, %198 : vector<2x128xf32>
    %c128 = arith.constant 128 : index
    %c0_197 = arith.constant 0 : index
    %200 = vector.load %arg6[%c128, %c0_197] : memref<512x64xf32, #tpu.memory_space<vmem>>, vector<128x64xf32>
    %cst_198 = arith.constant dense<0.000000e+00> : vector<2x64xf32>
    %201 = tpu.matmul %199, %200, %cst_198 {dimension_numbers = #tpu.dot_dimension_numbers<[1], [0], [0], [1], [0, 0, 1, 1], [], []>} : vector<2x128xf32>, vector<128x64xf32>, vector<2x64xf32> -> vector<2x64xf32>
    %202 = arith.addf %183, %201 : vector<2x64xf32>
    %c0_199 = arith.constant 0 : index
    %c0_200 = arith.constant 0 : index
    %c0_201 = arith.constant 0 : index
    %203 = vector.load %arg4[%c0_199, %c0_200, %c0_201] : memref<3x128x128xf32, #tpu.memory_space<vmem>>, vector<1x128x128xf32>
    %204 = vector.shape_cast %203 : vector<1x128x128xf32> to vector<128x128xf32>
    %cst_202 = arith.constant dense<0.000000e+00> : vector<2x128xf32>
    %205 = tpu.matmul %81, %204, %cst_202 {dimension_numbers = #tpu.dot_dimension_numbers<[1], [0], [0], [1], [0, 0, 1, 1], [], []>} : vector<2x128xf32>, vector<128x128xf32>, vector<2x128xf32> -> vector<2x128xf32>
    %c1_203 = arith.constant 1 : index
    %c0_204 = arith.constant 0 : index
    %c0_205 = arith.constant 0 : index
    %206 = vector.load %arg4[%c1_203, %c0_204, %c0_205] : memref<3x128x128xf32, #tpu.memory_space<vmem>>, vector<1x128x128xf32>
    %207 = vector.shape_cast %206 : vector<1x128x128xf32> to vector<128x128xf32>
    %cst_206 = arith.constant dense<0.000000e+00> : vector<2x128xf32>
    %208 = tpu.matmul %103, %207, %cst_206 {dimension_numbers = #tpu.dot_dimension_numbers<[1], [0], [0], [1], [0, 0, 1, 1], [], []>} : vector<2x128xf32>, vector<128x128xf32>, vector<2x128xf32> -> vector<2x128xf32>
    %209 = arith.addf %205, %208 : vector<2x128xf32>
    %c2_207 = arith.constant 2 : index
    %c0_208 = arith.constant 0 : index
    %c0_209 = arith.constant 0 : index
    %210 = vector.load %arg4[%c2_207, %c0_208, %c0_209] : memref<3x128x128xf32, #tpu.memory_space<vmem>>, vector<1x128x128xf32>
    %211 = vector.shape_cast %210 : vector<1x128x128xf32> to vector<128x128xf32>
    %cst_210 = arith.constant dense<0.000000e+00> : vector<2x128xf32>
    %212 = tpu.matmul %125, %211, %cst_210 {dimension_numbers = #tpu.dot_dimension_numbers<[1], [0], [0], [1], [0, 0, 1, 1], [], []>} : vector<2x128xf32>, vector<128x128xf32>, vector<2x128xf32> -> vector<2x128xf32>
    %213 = arith.addf %209, %212 : vector<2x128xf32>
    %c0_211 = arith.constant 0 : index
    %c0_212 = arith.constant 0 : index
    %214 = vector.load %arg5[%c0_211, %c0_212] : memref<1x128xf32, #tpu.memory_space<vmem>>, vector<1x128xf32>
    %215 = vector.broadcast %214 : vector<1x128xf32> to vector<2x128xf32>
    %216 = arith.addf %213, %215 : vector<2x128xf32>
    %cst_213 = arith.constant 0.000000e+00 : f32
    %217 = vector.broadcast %cst_213 : f32 to vector<2x128xf32>
    %218 = arith.maximumf %216, %217 : vector<2x128xf32>
    %c256 = arith.constant 256 : index
    %c0_214 = arith.constant 0 : index
    %219 = vector.load %arg6[%c256, %c0_214] : memref<512x64xf32, #tpu.memory_space<vmem>>, vector<128x64xf32>
    %cst_215 = arith.constant dense<0.000000e+00> : vector<2x64xf32>
    %220 = tpu.matmul %218, %219, %cst_215 {dimension_numbers = #tpu.dot_dimension_numbers<[1], [0], [0], [1], [0, 0, 1, 1], [], []>} : vector<2x128xf32>, vector<128x64xf32>, vector<2x64xf32> -> vector<2x64xf32>
    %221 = arith.addf %202, %220 : vector<2x64xf32>
    %c0_216 = arith.constant 0 : index
    %c0_217 = arith.constant 0 : index
    %c0_218 = arith.constant 0 : index
    %222 = vector.load %arg4[%c0_216, %c0_217, %c0_218] : memref<3x128x128xf32, #tpu.memory_space<vmem>>, vector<1x128x128xf32>
    %223 = vector.shape_cast %222 : vector<1x128x128xf32> to vector<128x128xf32>
    %cst_219 = arith.constant dense<0.000000e+00> : vector<2x128xf32>
    %224 = tpu.matmul %125, %223, %cst_219 {dimension_numbers = #tpu.dot_dimension_numbers<[1], [0], [0], [1], [0, 0, 1, 1], [], []>} : vector<2x128xf32>, vector<128x128xf32>, vector<2x128xf32> -> vector<2x128xf32>
    %c1_220 = arith.constant 1 : index
    %c0_221 = arith.constant 0 : index
    %c0_222 = arith.constant 0 : index
    %225 = vector.load %arg4[%c1_220, %c0_221, %c0_222] : memref<3x128x128xf32, #tpu.memory_space<vmem>>, vector<1x128x128xf32>
    %226 = vector.shape_cast %225 : vector<1x128x128xf32> to vector<128x128xf32>
    %cst_223 = arith.constant dense<0.000000e+00> : vector<2x128xf32>
    %227 = tpu.matmul %147, %226, %cst_223 {dimension_numbers = #tpu.dot_dimension_numbers<[1], [0], [0], [1], [0, 0, 1, 1], [], []>} : vector<2x128xf32>, vector<128x128xf32>, vector<2x128xf32> -> vector<2x128xf32>
    %228 = arith.addf %224, %227 : vector<2x128xf32>
    %c2_224 = arith.constant 2 : index
    %c0_225 = arith.constant 0 : index
    %c0_226 = arith.constant 0 : index
    %229 = vector.load %arg4[%c2_224, %c0_225, %c0_226] : memref<3x128x128xf32, #tpu.memory_space<vmem>>, vector<1x128x128xf32>
    %230 = vector.shape_cast %229 : vector<1x128x128xf32> to vector<128x128xf32>
    %cst_227 = arith.constant dense<0.000000e+00> : vector<2x128xf32>
    %231 = tpu.matmul %169, %230, %cst_227 {dimension_numbers = #tpu.dot_dimension_numbers<[1], [0], [0], [1], [0, 0, 1, 1], [], []>} : vector<2x128xf32>, vector<128x128xf32>, vector<2x128xf32> -> vector<2x128xf32>
    %232 = arith.addf %228, %231 : vector<2x128xf32>
    %c0_228 = arith.constant 0 : index
    %c0_229 = arith.constant 0 : index
    %233 = vector.load %arg5[%c0_228, %c0_229] : memref<1x128xf32, #tpu.memory_space<vmem>>, vector<1x128xf32>
    %234 = vector.broadcast %233 : vector<1x128xf32> to vector<2x128xf32>
    %235 = arith.addf %232, %234 : vector<2x128xf32>
    %cst_230 = arith.constant 0.000000e+00 : f32
    %236 = vector.broadcast %cst_230 : f32 to vector<2x128xf32>
    %237 = arith.maximumf %235, %236 : vector<2x128xf32>
    %c384 = arith.constant 384 : index
    %c0_231 = arith.constant 0 : index
    %238 = vector.load %arg6[%c384, %c0_231] : memref<512x64xf32, #tpu.memory_space<vmem>>, vector<128x64xf32>
    %cst_232 = arith.constant dense<0.000000e+00> : vector<2x64xf32>
    %239 = tpu.matmul %237, %238, %cst_232 {dimension_numbers = #tpu.dot_dimension_numbers<[1], [0], [0], [1], [0, 0, 1, 1], [], []>} : vector<2x128xf32>, vector<128x64xf32>, vector<2x64xf32> -> vector<2x64xf32>
    %240 = arith.addf %221, %239 : vector<2x64xf32>
    %c0_233 = arith.constant 0 : index
    %c0_234 = arith.constant 0 : index
    %241 = vector.load %arg7[%c0_233, %c0_234] : memref<1x64xf32, #tpu.memory_space<vmem>>, vector<1x64xf32>
    %242 = vector.broadcast %241 : vector<1x64xf32> to vector<2x64xf32>
    %243 = arith.addf %240, %242 : vector<2x64xf32>
    %cst_235 = arith.constant 0.000000e+00 : f32
    %244 = vector.broadcast %cst_235 : f32 to vector<2x64xf32>
    %245 = arith.maximumf %243, %244 : vector<2x64xf32>
    %c0_236 = arith.constant 0 : index
    %c0_237 = arith.constant 0 : index
    %246 = vector.load %arg8[%c0_236, %c0_237] : memref<64x128xf32, #tpu.memory_space<vmem>>, vector<64x128xf32>
    %cst_238 = arith.constant dense<0.000000e+00> : vector<2x128xf32>
    %247 = tpu.matmul %245, %246, %cst_238 {dimension_numbers = #tpu.dot_dimension_numbers<[1], [0], [0], [1], [0, 0, 1, 1], [], []>} : vector<2x64xf32>, vector<64x128xf32>, vector<2x128xf32> -> vector<2x128xf32>
    %c0_239 = arith.constant 0 : index
    %c0_240 = arith.constant 0 : index
    %248 = vector.load %arg9[%c0_239, %c0_240] : memref<1x128xf32, #tpu.memory_space<vmem>>, vector<1x128xf32>
    %249 = vector.broadcast %248 : vector<1x128xf32> to vector<2x128xf32>
    %250 = arith.addf %247, %249 : vector<2x128xf32>
    %c0_241 = arith.constant 0 : index
    %c0_242 = arith.constant 0 : index
    %251 = vector.load %arg10[%c0_241, %c0_242] : memref<2x128xf32, #tpu.memory_space<vmem>>, vector<2x128xf32>
    tpu.vector_store %arg10[%c0_241, %c0_242], %250 {strides = array<i32>} : memref<2x128xf32, #tpu.memory_space<vmem>>, vector<2x128xf32>,
    return
  }
  func.func @transform_0(%arg0: i32) -> (i32, i32, i32) {
    %c0_i32 = arith.constant 0 : i32
    %c0_i32_0 = arith.constant 0 : i32
    %c0_i32_1 = arith.constant 0 : i32
    %c0_i32_2 = arith.constant 0 : i32
    return %c0_i32, %c0_i32_0, %c0_i32_1 : i32, i32, i32
  }
  func.func @transform_1(%arg0: i32) -> (i32, i32, i32) {
    %c0_i32 = arith.constant 0 : i32
    %c0_i32_0 = arith.constant 0 : i32
    %c0_i32_1 = arith.constant 0 : i32
    %c0_i32_2 = arith.constant 0 : i32
    return %c0_i32, %c0_i32_0, %c0_i32_1 : i32, i32, i32
  }
  func.func @transform_2(%arg0: i32) -> (i32, i32) {
    %c0_i32 = arith.constant 0 : i32
    %c0_i32_0 = arith.constant 0 : i32
    %c0_i32_1 = arith.constant 0 : i32
    return %c0_i32, %c0_i32_0 : i32, i32
  }
  func.func @transform_3(%arg0: i32) -> (i32, i32, i32) {
    %c0_i32 = arith.constant 0 : i32
    %c0_i32_0 = arith.constant 0 : i32
    %c0_i32_1 = arith.constant 0 : i32
    %c0_i32_2 = arith.constant 0 : i32
    return %c0_i32, %c0_i32_0, %c0_i32_1 : i32, i32, i32
  }
  func.func @transform_4(%arg0: i32) -> (i32, i32) {
    %c0_i32 = arith.constant 0 : i32
    %c0_i32_0 = arith.constant 0 : i32
    %c0_i32_1 = arith.constant 0 : i32
    return %c0_i32, %c0_i32_0 : i32, i32
  }
  func.func @transform_5(%arg0: i32) -> (i32, i32) {
    %c0_i32 = arith.constant 0 : i32
    %c0_i32_0 = arith.constant 0 : i32
    %c0_i32_1 = arith.constant 0 : i32
    return %c0_i32, %c0_i32_0 : i32, i32
  }
  func.func @transform_6(%arg0: i32) -> (i32, i32) {
    %c0_i32 = arith.constant 0 : i32
    %c0_i32_0 = arith.constant 0 : i32
    %c0_i32_1 = arith.constant 0 : i32
    return %c0_i32, %c0_i32_0 : i32, i32
  }
  func.func @transform_7(%arg0: i32) -> (i32, i32) {
    %c0_i32 = arith.constant 0 : i32
    %c0_i32_0 = arith.constant 0 : i32
    %c0_i32_1 = arith.constant 0 : i32
    return %c0_i32, %c0_i32_0 : i32, i32
  }
  func.func @transform_8(%arg0: i32) -> (i32, i32) {
    %c0_i32 = arith.constant 0 : i32
    %c0_i32_0 = arith.constant 0 : i32
    %c0_i32_1 = arith.constant 0 : i32
    return %c0_i32, %c0_i32_0 : i32, i32
  }
  func.func @transform_9(%arg0: i32) -> (i32, i32) {
    %c0_i32 = arith.constant 0 : i32
    %c0_i32_0 = arith.constant 0 : i32
    %c0_i32_1 = arith.constant 0 : i32
    return %c0_i32, %c0_i32_0 : i32, i32
  }
}

</mosaic_0001>

<llo_original>
// kernel: qnetwork_forward.1
$region0: #{qnetwork_forward.1}
  #allocation0 [shape = 'u32[]', space=smem, size = 0x4, offset = 0x4, fixed_abs, tag = 'smem constant byte address 0x4 - core index']
  #allocation1 [shape = 'u32[72,128]{1,0:T(1,128)}', space=vmem, size = 0x9000, scoped, tag = 'internal scratch']
  %s0 = inlined_call_operand.vmem [shape: f32[2,16,64], index: 0, kind: input, shape index: {}]
  %s1 = inlined_call_operand.vmem [shape: f32[3,64,128], index: 1, kind: input, shape index: {}]
  %s2 = inlined_call_operand.vmem [shape: f32[1,128], index: 2, kind: input, shape index: {}]
  %s3 = inlined_call_operand.vmem [shape: f32[3,128,128], index: 3, kind: input, shape index: {}]
  %s4 = inlined_call_operand.vmem [shape: f32[1,128], index: 4, kind: input, shape index: {}]
  %s5 = inlined_call_operand.vmem [shape: f32[512,64], index: 5, kind: input, shape index: {}]
  %s6 = inlined_call_operand.vmem [shape: f32[1,64], index: 6, kind: input, shape index: {}]
  %s7 = inlined_call_operand.vmem [shape: f32[64,128], index: 7, kind: input, shape index: {}]
  %s8 = inlined_call_operand.vmem [shape: f32[1,128], index: 8, kind: input, shape index: {}]
  %s9 = inlined_call_operand.hbm [shape: f32[2,128], index: 9, kind: output, shape index: {}]
  %s10 = sld [smem:[#allocation0]]
  $region46: #{qnetwork_forward.1} parent=0
    _
  %s12 = ssub.s32 1, %s10
  %s13 = scalar_select 0, %s12, %s10
  $region1: #{qnetwork_forward.1} parent=0
    #allocation2 [shape = 'u8[1024]{0}', space=vmem, size = 0x400, scoped, tag = 'output window, operand 0, single buffered']
    #allocation3 [shape = 's32[1]{0}', space=sflag, size = 0x4, scoped, tag = 'scoped memory for qnetwork_forward.1']
    %14 = vsyncpa [#allocation3], 0
    // Predicated region
    $region2: #{qnetwork_forward.1} parent=1 // pred_check
      _
    $region3: #{qnetwork_forward.1} parent=1 // pred_check_branch
      %16 = sbr.rel (0) target = $region5
    $region4: #{qnetwork_forward.1} parent=1 // pred_region
      _
    $region5: #{qnetwork_forward.1} parent=1 // pred_fallthru
      _
    // Predicated region
    $region6: #{qnetwork_forward.1} parent=1 // pred_check
      _
    $region7: #{qnetwork_forward.1} parent=1 // pred_check_branch
      %18 = sbr.rel (0) target = $region9
    $region8: #{qnetwork_forward.1} parent=1 // pred_region
      _
    $region9: #{qnetwork_forward.1} parent=1 // pred_fallthru
      _
    // Predicated region
    $region10: #{qnetwork_forward.1} parent=1 // pred_check
      _
    $region11: #{qnetwork_forward.1} parent=1 // pred_check_branch
      %20 = sbr.rel (0) target = $region13
    $region12: #{qnetwork_forward.1} parent=1 // pred_region
      _
    $region13: #{qnetwork_forward.1} parent=1 // pred_fallthru
      _
    // Predicated region
    $region14: #{qnetwork_forward.1} parent=1 // pred_check
      _
    $region15: #{qnetwork_forward.1} parent=1 // pred_check_branch
      %22 = sbr.rel (0) target = $region17
    $region16: #{qnetwork_forward.1} parent=1 // pred_region
      _
    $region17: #{qnetwork_forward.1} parent=1 // pred_fallthru
      _
    // Predicated region
    $region18: #{qnetwork_forward.1} parent=1 // pred_check
      _
    $region19: #{qnetwork_forward.1} parent=1 // pred_check_branch
      %24 = sbr.rel (0) target = $region21
    $region20: #{qnetwork_forward.1} parent=1 // pred_region
      _
    $region21: #{qnetwork_forward.1} parent=1 // pred_fallthru
      _
    // Predicated region
    $region22: #{qnetwork_forward.1} parent=1 // pred_check
      _
    $region23: #{qnetwork_forward.1} parent=1 // pred_check_branch
      %26 = sbr.rel (0) target = $region25
    $region24: #{qnetwork_forward.1} parent=1 // pred_region
      _
    $region25: #{qnetwork_forward.1} parent=1 // pred_fallthru
      _
    // Predicated region
    $region26: #{qnetwork_forward.1} parent=1 // pred_check
      _
    $region27: #{qnetwork_forward.1} parent=1 // pred_check_branch
      %28 = sbr.rel (0) target = $region29
    $region28: #{qnetwork_forward.1} parent=1 // pred_region
      _
    $region29: #{qnetwork_forward.1} parent=1 // pred_fallthru
      _
    // Predicated region
    $region30: #{qnetwork_forward.1} parent=1 // pred_check
      _
    $region31: #{qnetwork_forward.1} parent=1 // pred_check_branch
      %30 = sbr.rel (0) target = $region33
    $region32: #{qnetwork_forward.1} parent=1 // pred_region
      _
    $region33: #{qnetwork_forward.1} parent=1 // pred_fallthru
      _
    // Predicated region
    $region34: #{qnetwork_forward.1} parent=1 // pred_check
      _
    $region35: #{qnetwork_forward.1} parent=1 // pred_check_branch
      %32 = sbr.rel (0) target = $region37
    $region36: #{qnetwork_forward.1} parent=1 // pred_region
      _
    $region37: #{qnetwork_forward.1} parent=1 // pred_fallthru
      _
    %v33 = vld [vmem:[%s0] sm:$0x1]
    %v34 = vld [vmem:[%s0 + $0x10] sm:$0x1]
    %s35 = scalar_lea.vmem %s1, 64
    %v36 = vld [vmem:[%s35] sm:$0xff]
    %v37 = vld [vmem:[%s35 + $0x8] sm:$0xff]
    %v38 = vld [vmem:[%s35 + $0x10] sm:$0xff]
    %v39 = vld [vmem:[%s35 + $0x18] sm:$0xff]
    %v40 = vld [vmem:[%s35 + $0x20] sm:$0xff]
    %v41 = vld [vmem:[%s35 + $0x28] sm:$0xff]
    %v42 = vld [vmem:[%s35 + $0x30] sm:$0xff]
    %v43 = vld [vmem:[%s35 + $0x38] sm:$0xff]
    %v44 = vld [vmem:[%s0 + $0x1] sm:$0x1]
    %v45 = vld [vmem:[%s0 + $0x11] sm:$0x1]
    %s46 = scalar_lea.vmem %s1, 128
    %v47 = vld [vmem:[%s46] sm:$0xff]
    %v48 = vld [vmem:[%s46 + $0x8] sm:$0xff]
    %v49 = vld [vmem:[%s46 + $0x10] sm:$0xff]
    %v50 = vld [vmem:[%s46 + $0x18] sm:$0xff]
    %v51 = vld [vmem:[%s46 + $0x20] sm:$0xff]
    %v52 = vld [vmem:[%s46 + $0x28] sm:$0xff]
    %v53 = vld [vmem:[%s46 + $0x30] sm:$0xff]
    %v54 = vld [vmem:[%s46 + $0x38] sm:$0xff]
    %v57 = vrot.slane %v45, 7
    %vm58 = vcmask 1041409
    %v59 = vsel %vm58, %v57, %v44
    %vm60 = vcmask 523264
    %v61 = vsel %vm60, %v59, 0
    %63 = vmatpush.msra.mxu0 0.0
    %64 = vmatpush.msra.mxu0 0.0
    %65 = vmatpush.msra.mxu0 0.0
    %66 = vmatpush.msra.mxu0 0.0
    %67 = vmatpush.msra.mxu0 0.0
    %68 = vmatpush.msra.mxu0 0.0
    %69 = vmatpush.msra.mxu0 0.0
    %70 = vmatpush.msra.mxu0 0.0
    %71 = vmatpush.msra.mxu0 %v54
    %72 = vmatpush.msra.mxu0 %v53
    %73 = vmatpush.msra.mxu0 %v52
    %74 = vmatpush.msra.mxu0 %v51
    %75 = vmatpush.msra.mxu0 %v50
    %76 = vmatpush.msra.mxu0 %v49
    %77 = vmatpush.msra.mxu0 %v48
    %78 = vmatpush.msra.mxu0 %v47
    %79 = vmatmul.f32.gmra.mxu0 %v61
    %v80 = vpop.f32.mrf.mxu0
    %v81 = vadd.f32 0.0, %v80
    %82 = vdwg.mxu0
    %v85 = vrot.slane %v34, 7
    %v86 = vsel %vm58, %v85, %v33
    %v87 = vsel %vm60, %v86, 0
    %89 = vmatpush.msra.mxu0 0.0
    %90 = vmatpush.msra.mxu0 0.0
    %91 = vmatpush.msra.mxu0 0.0
    %92 = vmatpush.msra.mxu0 0.0
    %93 = vmatpush.msra.mxu0 0.0
    %94 = vmatpush.msra.mxu0 0.0
    %95 = vmatpush.msra.mxu0 0.0
    %96 = vmatpush.msra.mxu0 0.0
    %97 = vmatpush.msra.mxu0 %v43
    %98 = vmatpush.msra.mxu0 %v42
    %99 = vmatpush.msra.mxu0 %v41
    %100 = vmatpush.msra.mxu0 %v40
    %101 = vmatpush.msra.mxu0 %v39
    %102 = vmatpush.msra.mxu0 %v38
    %103 = vmatpush.msra.mxu0 %v37
    %104 = vmatpush.msra.mxu0 %v36
    %105 = vmatmul.f32.gmra.mxu0 %v87
    %v106 = vpop.f32.mrf.mxu0
    %v107 = vadd.f32 %v81, %v106
    %108 = vdwg.mxu0
    %v109 = vld [vmem:[%s2] sm:$0x1]
    %v111 = vperm.slane %v109, 0
    %v113 = vadd.f32 %v107, %v111
    %v114 = vmax.f32 %v113, 0.0
    %v115 = vld [vmem:[%s1] sm:$0xff]
    %v116 = vld [vmem:[%s1 + $0x8] sm:$0xff]
    %v117 = vld [vmem:[%s1 + $0x10] sm:$0xff]
    %v118 = vld [vmem:[%s1 + $0x18] sm:$0xff]
    %v119 = vld [vmem:[%s1 + $0x20] sm:$0xff]
    %v120 = vld [vmem:[%s1 + $0x28] sm:$0xff]
    %v121 = vld [vmem:[%s1 + $0x30] sm:$0xff]
    %v122 = vld [vmem:[%s1 + $0x38] sm:$0xff]
    %v123 = vld [vmem:[%s0 + $0x2] sm:$0x1]
    %v124 = vld [vmem:[%s0 + $0x12] sm:$0x1]
    %v127 = vrot.slane %v124, 7
    %v128 = vsel %vm58, %v127, %v123
    %v129 = vsel %vm60, %v128, 0
    %131 = vmatpush.msra.mxu0 0.0
    %132 = vmatpush.msra.mxu0 0.0
    %133 = vmatpush.msra.mxu0 0.0
    %134 = vmatpush.msra.mxu0 0.0
    %135 = vmatpush.msra.mxu0 0.0
    %136 = vmatpush.msra.mxu0 0.0
    %137 = vmatpush.msra.mxu0 0.0
    %138 = vmatpush.msra.mxu0 0.0
    %139 = vmatpush.msra.mxu0 %v43
    %140 = vmatpush.msra.mxu0 %v42
    %141 = vmatpush.msra.mxu0 %v41
    %142 = vmatpush.msra.mxu0 %v40
    %143 = vmatpush.msra.mxu0 %v39
    %144 = vmatpush.msra.mxu0 %v38
    %145 = vmatpush.msra.mxu0 %v37
    %146 = vmatpush.msra.mxu0 %v36
    %147 = vmatmul.f32.gmra.mxu0 %v129
    %v148 = vpop.f32.mrf.mxu0
    %v149 = vadd.f32 0.0, %v148
    %150 = vdwg.mxu0
    %151 = vmatpush.msra.mxu0 0.0
    %152 = vmatpush.msra.mxu0 0.0
    %153 = vmatpush.msra.mxu0 0.0
    %154 = vmatpush.msra.mxu0 0.0
    %155 = vmatpush.msra.mxu0 0.0
    %156 = vmatpush.msra.mxu0 0.0
    %157 = vmatpush.msra.mxu0 0.0
    %158 = vmatpush.msra.mxu0 0.0
    %159 = vmatpush.msra.mxu0 %v122
    %160 = vmatpush.msra.mxu0 %v121
    %161 = vmatpush.msra.mxu0 %v120
    %162 = vmatpush.msra.mxu0 %v119
    %163 = vmatpush.msra.mxu0 %v118
    %164 = vmatpush.msra.mxu0 %v117
    %165 = vmatpush.msra.mxu0 %v116
    %166 = vmatpush.msra.mxu0 %v115
    %167 = vmatmul.f32.gmra.mxu0 %v61
    %v168 = vpop.f32.mrf.mxu0
    %v169 = vadd.f32 %v149, %v168
    %170 = vdwg.mxu0
    %v171 = vld [vmem:[%s0 + $0x3] sm:$0x1]
    %v172 = vld [vmem:[%s0 + $0x13] sm:$0x1]
    %v175 = vrot.slane %v172, 7
    %v176 = vsel %vm58, %v175, %v171
    %v177 = vsel %vm60, %v176, 0
    %179 = vmatpush.msra.mxu0 0.0
    %180 = vmatpush.msra.mxu0 0.0
    %181 = vmatpush.msra.mxu0 0.0
    %182 = vmatpush.msra.mxu0 0.0
    %183 = vmatpush.msra.mxu0 0.0
    %184 = vmatpush.msra.mxu0 0.0
    %185 = vmatpush.msra.mxu0 0.0
    %186 = vmatpush.msra.mxu0 0.0
    %187 = vmatpush.msra.mxu0 %v54
    %188 = vmatpush.msra.mxu0 %v53
    %189 = vmatpush.msra.mxu0 %v52
    %190 = vmatpush.msra.mxu0 %v51
    %191 = vmatpush.msra.mxu0 %v50
    %192 = vmatpush.msra.mxu0 %v49
    %193 = vmatpush.msra.mxu0 %v48
    %194 = vmatpush.msra.mxu0 %v47
    %195 = vmatmul.f32.gmra.mxu0 %v177
    %v196 = vpop.f32.mrf.mxu0
    %v197 = vadd.f32 0.0, %v196
    %198 = vdwg.mxu0
    %v199 = vadd.f32 %v169, %v197
    %v200 = vadd.f32 %v199, %v111
    %v201 = vmax.f32 %v200, 0.0
    %v202 = vld [vmem:[%s0 + $0x4] sm:$0x1]
    %v203 = vld [vmem:[%s0 + $0x14] sm:$0x1]
    %v206 = vrot.slane %v203, 7
    %v207 = vsel %vm58, %v206, %v202
    %v208 = vsel %vm60, %v207, 0
    %210 = vmatpush.msra.mxu0 0.0
    %211 = vmatpush.msra.mxu0 0.0
    %212 = vmatpush.msra.mxu0 0.0
    %213 = vmatpush.msra.mxu0 0.0
    %214 = vmatpush.msra.mxu0 0.0
    %215 = vmatpush.msra.mxu0 0.0
    %216 = vmatpush.msra.mxu0 0.0
    %217 = vmatpush.msra.mxu0 0.0
    %218 = vmatpush.msra.mxu0 %v43
    %219 = vmatpush.msra.mxu0 %v42
    %220 = vmatpush.msra.mxu0 %v41
    %221 = vmatpush.msra.mxu0 %v40
    %222 = vmatpush.msra.mxu0 %v39
    %223 = vmatpush.msra.mxu0 %v38
    %224 = vmatpush.msra.mxu0 %v37
    %225 = vmatpush.msra.mxu0 %v36
    %226 = vmatmul.f32.gmra.mxu0 %v208
    %v227 = vpop.f32.mrf.mxu0
    %v228 = vadd.f32 0.0, %v227
    %229 = vdwg.mxu0
    %230 = vmatpush.msra.mxu0 0.0
    %231 = vmatpush.msra.mxu0 0.0
    %232 = vmatpush.msra.mxu0 0.0
    %233 = vmatpush.msra.mxu0 0.0
    %234 = vmatpush.msra.mxu0 0.0
    %235 = vmatpush.msra.mxu0 0.0
    %236 = vmatpush.msra.mxu0 0.0
    %237 = vmatpush.msra.mxu0 0.0
    %238 = vmatpush.msra.mxu0 %v122
    %239 = vmatpush.msra.mxu0 %v121
    %240 = vmatpush.msra.mxu0 %v120
    %241 = vmatpush.msra.mxu0 %v119
    %242 = vmatpush.msra.mxu0 %v118
    %243 = vmatpush.msra.mxu0 %v117
    %244 = vmatpush.msra.mxu0 %v116
    %245 = vmatpush.msra.mxu0 %v115
    %246 = vmatmul.f32.gmra.mxu0 %v177
    %v247 = vpop.f32.mrf.mxu0
    %v248 = vadd.f32 %v228, %v247
    %249 = vdwg.mxu0
    %v250 = vld [vmem:[%s0 + $0x5] sm:$0x1]
    %v251 = vld [vmem:[%s0 + $0x15] sm:$0x1]
    %v254 = vrot.slane %v251, 7
    %v255 = vsel %vm58, %v254, %v250
    %v256 = vsel %vm60, %v255, 0
    %258 = vmatpush.msra.mxu0 0.0
    %259 = vmatpush.msra.mxu0 0.0
    %260 = vmatpush.msra.mxu0 0.0
    %261 = vmatpush.msra.mxu0 0.0
    %262 = vmatpush.msra.mxu0 0.0
    %263 = vmatpush.msra.mxu0 0.0
    %264 = vmatpush.msra.mxu0 0.0
    %265 = vmatpush.msra.mxu0 0.0
    %266 = vmatpush.msra.mxu0 %v54
    %267 = vmatpush.msra.mxu0 %v53
    %268 = vmatpush.msra.mxu0 %v52
    %269 = vmatpush.msra.mxu0 %v51
    %270 = vmatpush.msra.mxu0 %v50
    %271 = vmatpush.msra.mxu0 %v49
    %272 = vmatpush.msra.mxu0 %v48
    %273 = vmatpush.msra.mxu0 %v47
    %274 = vmatmul.f32.gmra.mxu0 %v256
    %v275 = vpop.f32.mrf.mxu0
    %v276 = vadd.f32 0.0, %v275
    %277 = vdwg.mxu0
    %v278 = vadd.f32 %v248, %v276
    %v279 = vadd.f32 %v278, %v111
    %v280 = vmax.f32 %v279, 0.0
    %v281 = vld [vmem:[%s0 + $0x6] sm:$0x1]
    %v282 = vld [vmem:[%s0 + $0x16] sm:$0x1]
    %v285 = vrot.slane %v282, 7
    %v286 = vsel %vm58, %v285, %v281
    %v287 = vsel %vm60, %v286, 0
    %289 = vmatpush.msra.mxu0 0.0
    %290 = vmatpush.msra.mxu0 0.0
    %291 = vmatpush.msra.mxu0 0.0
    %292 = vmatpush.msra.mxu0 0.0
    %293 = vmatpush.msra.mxu0 0.0
    %294 = vmatpush.msra.mxu0 0.0
    %295 = vmatpush.msra.mxu0 0.0
    %296 = vmatpush.msra.mxu0 0.0
    %297 = vmatpush.msra.mxu0 %v43
    %298 = vmatpush.msra.mxu0 %v42
    %299 = vmatpush.msra.mxu0 %v41
    %300 = vmatpush.msra.mxu0 %v40
    %301 = vmatpush.msra.mxu0 %v39
    %302 = vmatpush.msra.mxu0 %v38
    %303 = vmatpush.msra.mxu0 %v37
    %304 = vmatpush.msra.mxu0 %v36
    %305 = vmatmul.f32.gmra.mxu0 %v287
    %v306 = vpop.f32.mrf.mxu0
    %v307 = vadd.f32 0.0, %v306
    %308 = vdwg.mxu0
    %309 = vmatpush.msra.mxu0 0.0
    %310 = vmatpush.msra.mxu0 0.0
    %311 = vmatpush.msra.mxu0 0.0
    %312 = vmatpush.msra.mxu0 0.0
    %313 = vmatpush.msra.mxu0 0.0
    %314 = vmatpush.msra.mxu0 0.0
    %315 = vmatpush.msra.mxu0 0.0
    %316 = vmatpush.msra.mxu0 0.0
    %317 = vmatpush.msra.mxu0 %v122
    %318 = vmatpush.msra.mxu0 %v121
    %319 = vmatpush.msra.mxu0 %v120
    %320 = vmatpush.msra.mxu0 %v119
    %321 = vmatpush.msra.mxu0 %v118
    %322 = vmatpush.msra.mxu0 %v117
    %323 = vmatpush.msra.mxu0 %v116
    %324 = vmatpush.msra.mxu0 %v115
    %325 = vmatmul.f32.gmra.mxu0 %v256
    %v326 = vpop.f32.mrf.mxu0
    %v327 = vadd.f32 %v307, %v326
    %328 = vdwg.mxu0
    %v329 = vld [vmem:[%s0 + $0x7] sm:$0x1]
    %v330 = vld [vmem:[%s0 + $0x17] sm:$0x1]
    %v333 = vrot.slane %v330, 7
    %v334 = vsel %vm58, %v333, %v329
    %v335 = vsel %vm60, %v334, 0
    %337 = vmatpush.msra.mxu0 0.0
    %338 = vmatpush.msra.mxu0 0.0
    %339 = vmatpush.msra.mxu0 0.0
    %340 = vmatpush.msra.mxu0 0.0
    %341 = vmatpush.msra.mxu0 0.0
    %342 = vmatpush.msra.mxu0 0.0
    %343 = vmatpush.msra.mxu0 0.0
    %344 = vmatpush.msra.mxu0 0.0
    %345 = vmatpush.msra.mxu0 %v54
    %346 = vmatpush.msra.mxu0 %v53
    %347 = vmatpush.msra.mxu0 %v52
    %348 = vmatpush.msra.mxu0 %v51
    %349 = vmatpush.msra.mxu0 %v50
    %350 = vmatpush.msra.mxu0 %v49
    %351 = vmatpush.msra.mxu0 %v48
    %352 = vmatpush.msra.mxu0 %v47
    %353 = vmatmul.f32.gmra.mxu0 %v335
    %v354 = vpop.f32.mrf.mxu0
    %v355 = vadd.f32 0.0, %v354
    %356 = vdwg.mxu0
    %v357 = vadd.f32 %v327, %v355
    %v358 = vadd.f32 %v357, %v111
    %v359 = vmax.f32 %v358, 0.0
    %v360 = vld [vmem:[%s0 + $0x8] sm:$0x1]
    %v361 = vld [vmem:[%s0 + $0x18] sm:$0x1]
    %v364 = vrot.slane %v361, 7
    %v365 = vsel %vm58, %v364, %v360
    %v366 = vsel %vm60, %v365, 0
    %368 = vmatpush.msra.mxu0 0.0
    %369 = vmatpush.msra.mxu0 0.0
    %370 = vmatpush.msra.mxu0 0.0
    %371 = vmatpush.msra.mxu0 0.0
    %372 = vmatpush.msra.mxu0 0.0
    %373 = vmatpush.msra.mxu0 0.0
    %374 = vmatpush.msra.mxu0 0.0
    %375 = vmatpush.msra.mxu0 0.0
    %376 = vmatpush.msra.mxu0 %v43
    %377 = vmatpush.msra.mxu0 %v42
    %378 = vmatpush.msra.mxu0 %v41
    %379 = vmatpush.msra.mxu0 %v40
    %380 = vmatpush.msra.mxu0 %v39
    %381 = vmatpush.msra.mxu0 %v38
    %382 = vmatpush.msra.mxu0 %v37
    %383 = vmatpush.msra.mxu0 %v36
    %384 = vmatmul.f32.gmra.mxu0 %v366
    %v385 = vpop.f32.mrf.mxu0
    %v386 = vadd.f32 0.0, %v385
    %387 = vdwg.mxu0
    %388 = vmatpush.msra.mxu0 0.0
    %389 = vmatpush.msra.mxu0 0.0
    %390 = vmatpush.msra.mxu0 0.0
    %391 = vmatpush.msra.mxu0 0.0
    %392 = vmatpush.msra.mxu0 0.0
    %393 = vmatpush.msra.mxu0 0.0
    %394 = vmatpush.msra.mxu0 0.0
    %395 = vmatpush.msra.mxu0 0.0
    %396 = vmatpush.msra.mxu0 %v122
    %397 = vmatpush.msra.mxu0 %v121
    %398 = vmatpush.msra.mxu0 %v120
    %399 = vmatpush.msra.mxu0 %v119
    %400 = vmatpush.msra.mxu0 %v118
    %401 = vmatpush.msra.mxu0 %v117
    %402 = vmatpush.msra.mxu0 %v116
    %403 = vmatpush.msra.mxu0 %v115
    %404 = vmatmul.f32.gmra.mxu0 %v335
    %v405 = vpop.f32.mrf.mxu0
    %v406 = vadd.f32 %v386, %v405
    %407 = vdwg.mxu0
    %v408 = vld [vmem:[%s0 + $0x9] sm:$0x1]
    %v409 = vld [vmem:[%s0 + $0x19] sm:$0x1]
    %v412 = vrot.slane %v409, 7
    %v413 = vsel %vm58, %v412, %v408
    %v414 = vsel %vm60, %v413, 0
    %416 = vmatpush.msra.mxu0 0.0
    %417 = vmatpush.msra.mxu0 0.0
    %418 = vmatpush.msra.mxu0 0.0
    %419 = vmatpush.msra.mxu0 0.0
    %420 = vmatpush.msra.mxu0 0.0
    %421 = vmatpush.msra.mxu0 0.0
    %422 = vmatpush.msra.mxu0 0.0
    %423 = vmatpush.msra.mxu0 0.0
    %424 = vmatpush.msra.mxu0 %v54
    %425 = vmatpush.msra.mxu0 %v53
    %426 = vmatpush.msra.mxu0 %v52
    %427 = vmatpush.msra.mxu0 %v51
    %428 = vmatpush.msra.mxu0 %v50
    %429 = vmatpush.msra.mxu0 %v49
    %430 = vmatpush.msra.mxu0 %v48
    %431 = vmatpush.msra.mxu0 %v47
    %432 = vmatmul.f32.gmra.mxu0 %v414
    %v433 = vpop.f32.mrf.mxu0
    %v434 = vadd.f32 0.0, %v433
    %435 = vdwg.mxu0
    %v436 = vadd.f32 %v406, %v434
    %v437 = vadd.f32 %v436, %v111
    %v438 = vmax.f32 %v437, 0.0
    %v439 = vld [vmem:[%s0 + $0xa] sm:$0x1]
    %v440 = vld [vmem:[%s0 + $0x1a] sm:$0x1]
    %v443 = vrot.slane %v440, 7
    %v444 = vsel %vm58, %v443, %v439
    %v445 = vsel %vm60, %v444, 0
    %447 = vmatpush.msra.mxu0 0.0
    %448 = vmatpush.msra.mxu0 0.0
    %449 = vmatpush.msra.mxu0 0.0
    %450 = vmatpush.msra.mxu0 0.0
    %451 = vmatpush.msra.mxu0 0.0
    %452 = vmatpush.msra.mxu0 0.0
    %453 = vmatpush.msra.mxu0 0.0
    %454 = vmatpush.msra.mxu0 0.0
    %455 = vmatpush.msra.mxu0 %v43
    %456 = vmatpush.msra.mxu0 %v42
    %457 = vmatpush.msra.mxu0 %v41
    %458 = vmatpush.msra.mxu0 %v40
    %459 = vmatpush.msra.mxu0 %v39
    %460 = vmatpush.msra.mxu0 %v38
    %461 = vmatpush.msra.mxu0 %v37
    %462 = vmatpush.msra.mxu0 %v36
    %463 = vmatmul.f32.gmra.mxu0 %v445
    %v464 = vpop.f32.mrf.mxu0
    %v465 = vadd.f32 0.0, %v464
    %466 = vdwg.mxu0
    %467 = vmatpush.msra.mxu0 0.0
    %468 = vmatpush.msra.mxu0 0.0
    %469 = vmatpush.msra.mxu0 0.0
    %470 = vmatpush.msra.mxu0 0.0
    %471 = vmatpush.msra.mxu0 0.0
    %472 = vmatpush.msra.mxu0 0.0
    %473 = vmatpush.msra.mxu0 0.0
    %474 = vmatpush.msra.mxu0 0.0
    %475 = vmatpush.msra.mxu0 %v122
    %476 = vmatpush.msra.mxu0 %v121
    %477 = vmatpush.msra.mxu0 %v120
    %478 = vmatpush.msra.mxu0 %v119
    %479 = vmatpush.msra.mxu0 %v118
    %480 = vmatpush.msra.mxu0 %v117
    %481 = vmatpush.msra.mxu0 %v116
    %482 = vmatpush.msra.mxu0 %v115
    %483 = vmatmul.f32.gmra.mxu0 %v414
    %v484 = vpop.f32.mrf.mxu0
    %v485 = vadd.f32 %v465, %v484
    %486 = vdwg.mxu0
    %v487 = vld [vmem:[%s0 + $0xb] sm:$0x1]
    %v488 = vld [vmem:[%s0 + $0x1b] sm:$0x1]
    %v491 = vrot.slane %v488, 7
    %v492 = vsel %vm58, %v491, %v487
    %v493 = vsel %vm60, %v492, 0
    %495 = vmatpush.msra.mxu0 0.0
    %496 = vmatpush.msra.mxu0 0.0
    %497 = vmatpush.msra.mxu0 0.0
    %498 = vmatpush.msra.mxu0 0.0
    %499 = vmatpush.msra.mxu0 0.0
    %500 = vmatpush.msra.mxu0 0.0
    %501 = vmatpush.msra.mxu0 0.0
    %502 = vmatpush.msra.mxu0 0.0
    %503 = vmatpush.msra.mxu0 %v54
    %504 = vmatpush.msra.mxu0 %v53
    %505 = vmatpush.msra.mxu0 %v52
    %506 = vmatpush.msra.mxu0 %v51
    %507 = vmatpush.msra.mxu0 %v50
    %508 = vmatpush.msra.mxu0 %v49
    %509 = vmatpush.msra.mxu0 %v48
    %510 = vmatpush.msra.mxu0 %v47
    %511 = vmatmul.f32.gmra.mxu0 %v493
    %v512 = vpop.f32.mrf.mxu0
    %v513 = vadd.f32 0.0, %v512
    %514 = vdwg.mxu0
    %v515 = vadd.f32 %v485, %v513
    %v516 = vadd.f32 %v515, %v111
    %v517 = vmax.f32 %v516, 0.0
    %v518 = vld [vmem:[%s0 + $0xc] sm:$0x1]
    %v519 = vld [vmem:[%s0 + $0x1c] sm:$0x1]
    %v522 = vrot.slane %v519, 7
    %v523 = vsel %vm58, %v522, %v518
    %v524 = vsel %vm60, %v523, 0
    %526 = vmatpush.msra.mxu0 0.0
    %527 = vmatpush.msra.mxu0 0.0
    %528 = vmatpush.msra.mxu0 0.0
    %529 = vmatpush.msra.mxu0 0.0
    %530 = vmatpush.msra.mxu0 0.0
    %531 = vmatpush.msra.mxu0 0.0
    %532 = vmatpush.msra.mxu0 0.0
    %533 = vmatpush.msra.mxu0 0.0
    %534 = vmatpush.msra.mxu0 %v43
    %535 = vmatpush.msra.mxu0 %v42
    %536 = vmatpush.msra.mxu0 %v41
    %537 = vmatpush.msra.mxu0 %v40
    %538 = vmatpush.msra.mxu0 %v39
    %539 = vmatpush.msra.mxu0 %v38
    %540 = vmatpush.msra.mxu0 %v37
    %541 = vmatpush.msra.mxu0 %v36
    %542 = vmatmul.f32.gmra.mxu0 %v524
    %v543 = vpop.f32.mrf.mxu0
    %v544 = vadd.f32 0.0, %v543
    %545 = vdwg.mxu0
    %546 = vmatpush.msra.mxu0 0.0
    %547 = vmatpush.msra.mxu0 0.0
    %548 = vmatpush.msra.mxu0 0.0
    %549 = vmatpush.msra.mxu0 0.0
    %550 = vmatpush.msra.mxu0 0.0
    %551 = vmatpush.msra.mxu0 0.0
    %552 = vmatpush.msra.mxu0 0.0
    %553 = vmatpush.msra.mxu0 0.0
    %554 = vmatpush.msra.mxu0 %v122
    %555 = vmatpush.msra.mxu0 %v121
    %556 = vmatpush.msra.mxu0 %v120
    %557 = vmatpush.msra.mxu0 %v119
    %558 = vmatpush.msra.mxu0 %v118
    %559 = vmatpush.msra.mxu0 %v117
    %560 = vmatpush.msra.mxu0 %v116
    %561 = vmatpush.msra.mxu0 %v115
    %562 = vmatmul.f32.gmra.mxu0 %v493
    %v563 = vpop.f32.mrf.mxu0
    %v564 = vadd.f32 %v544, %v563
    %565 = vdwg.mxu0
    %v566 = vld [vmem:[%s0 + $0xd] sm:$0x1]
    %v567 = vld [vmem:[%s0 + $0x1d] sm:$0x1]
    %v570 = vrot.slane %v567, 7
    %v571 = vsel %vm58, %v570, %v566
    %v572 = vsel %vm60, %v571, 0
    %574 = vmatpush.msra.mxu0 0.0
    %575 = vmatpush.msra.mxu0 0.0
    %576 = vmatpush.msra.mxu0 0.0
    %577 = vmatpush.msra.mxu0 0.0
    %578 = vmatpush.msra.mxu0 0.0
    %579 = vmatpush.msra.mxu0 0.0
    %580 = vmatpush.msra.mxu0 0.0
    %581 = vmatpush.msra.mxu0 0.0
    %582 = vmatpush.msra.mxu0 %v54
    %583 = vmatpush.msra.mxu0 %v53
    %584 = vmatpush.msra.mxu0 %v52
    %585 = vmatpush.msra.mxu0 %v51
    %586 = vmatpush.msra.mxu0 %v50
    %587 = vmatpush.msra.mxu0 %v49
    %588 = vmatpush.msra.mxu0 %v48
    %589 = vmatpush.msra.mxu0 %v47
    %590 = vmatmul.f32.gmra.mxu0 %v572
    %v591 = vpop.f32.mrf.mxu0
    %v592 = vadd.f32 0.0, %v591
    %593 = vdwg.mxu0
    %v594 = vadd.f32 %v564, %v592
    %v595 = vadd.f32 %v594, %v111
    %v596 = vmax.f32 %v595, 0.0
    %v597 = vld [vmem:[%s0 + $0xe] sm:$0x1]
    %v598 = vld [vmem:[%s0 + $0x1e] sm:$0x1]
    %v601 = vrot.slane %v598, 7
    %v602 = vsel %vm58, %v601, %v597
    %v603 = vsel %vm60, %v602, 0
    %605 = vmatpush.msra.mxu0 0.0
    %606 = vmatpush.msra.mxu0 0.0
    %607 = vmatpush.msra.mxu0 0.0
    %608 = vmatpush.msra.mxu0 0.0
    %609 = vmatpush.msra.mxu0 0.0
    %610 = vmatpush.msra.mxu0 0.0
    %611 = vmatpush.msra.mxu0 0.0
    %612 = vmatpush.msra.mxu0 0.0
    %613 = vmatpush.msra.mxu0 %v43
    %614 = vmatpush.msra.mxu0 %v42
    %615 = vmatpush.msra.mxu0 %v41
    %616 = vmatpush.msra.mxu0 %v40
    %617 = vmatpush.msra.mxu0 %v39
    %618 = vmatpush.msra.mxu0 %v38
    %619 = vmatpush.msra.mxu0 %v37
    %620 = vmatpush.msra.mxu0 %v36
    %621 = vmatmul.f32.gmra.mxu0 %v603
    %v622 = vpop.f32.mrf.mxu0
    %v623 = vadd.f32 0.0, %v622
    %624 = vdwg.mxu0
    %625 = vmatpush.msra.mxu0 0.0
    %626 = vmatpush.msra.mxu0 0.0
    %627 = vmatpush.msra.mxu0 0.0
    %628 = vmatpush.msra.mxu0 0.0
    %629 = vmatpush.msra.mxu0 0.0
    %630 = vmatpush.msra.mxu0 0.0
    %631 = vmatpush.msra.mxu0 0.0
    %632 = vmatpush.msra.mxu0 0.0
    %633 = vmatpush.msra.mxu0 %v122
    %634 = vmatpush.msra.mxu0 %v121
    %635 = vmatpush.msra.mxu0 %v120
    %636 = vmatpush.msra.mxu0 %v119
    %637 = vmatpush.msra.mxu0 %v118
    %638 = vmatpush.msra.mxu0 %v117
    %639 = vmatpush.msra.mxu0 %v116
    %640 = vmatpush.msra.mxu0 %v115
    %641 = vmatmul.f32.gmra.mxu0 %v572
    %v642 = vpop.f32.mrf.mxu0
    %v643 = vadd.f32 %v623, %v642
    %644 = vdwg.mxu0
    %v645 = vld [vmem:[%s0 + $0xf] sm:$0x1]
    %v646 = vld [vmem:[%s0 + $0x1f] sm:$0x1]
    %v649 = vrot.slane %v646, 7
    %v650 = vsel %vm58, %v649, %v645
    %v651 = vsel %vm60, %v650, 0
    %653 = vmatpush.msra.mxu0 0.0
    %654 = vmatpush.msra.mxu0 0.0
    %655 = vmatpush.msra.mxu0 0.0
    %656 = vmatpush.msra.mxu0 0.0
    %657 = vmatpush.msra.mxu0 0.0
    %658 = vmatpush.msra.mxu0 0.0
    %659 = vmatpush.msra.mxu0 0.0
    %660 = vmatpush.msra.mxu0 0.0
    %661 = vmatpush.msra.mxu0 %v54
    %662 = vmatpush.msra.mxu0 %v53
    %663 = vmatpush.msra.mxu0 %v52
    %664 = vmatpush.msra.mxu0 %v51
    %665 = vmatpush.msra.mxu0 %v50
    %666 = vmatpush.msra.mxu0 %v49
    %667 = vmatpush.msra.mxu0 %v48
    %668 = vmatpush.msra.mxu0 %v47
    %669 = vmatmul.f32.gmra.mxu0 %v651
    %v670 = vpop.f32.mrf.mxu0
    %v671 = vadd.f32 0.0, %v670
    %672 = vdwg.mxu0
    %v673 = vadd.f32 %v643, %v671
    %v674 = vadd.f32 %v673, %v111
    %v675 = vmax.f32 %v674, 0.0
    %s676 = scalar_lea.vmem %s3, 128
    %v677 = vld [vmem:[%s676] sm:$0xff]
    %v678 = vld [vmem:[%s676 + $0x8] sm:$0xff]
    %v679 = vld [vmem:[%s676 + $0x10] sm:$0xff]
    %v680 = vld [vmem:[%s676 + $0x18] sm:$0xff]
    %v681 = vld [vmem:[%s676 + $0x20] sm:$0xff]
    %v682 = vld [vmem:[%s676 + $0x28] sm:$0xff]
    %v683 = vld [vmem:[%s676 + $0x30] sm:$0xff]
    %v684 = vld [vmem:[%s676 + $0x38] sm:$0xff]
    %v685 = vld [vmem:[%s676 + $0x40] sm:$0xff]
    %v686 = vld [vmem:[%s676 + $0x48] sm:$0xff]
    %v687 = vld [vmem:[%s676 + $0x50] sm:$0xff]
    %v688 = vld [vmem:[%s676 + $0x58] sm:$0xff]
    %v689 = vld [vmem:[%s676 + $0x60] sm:$0xff]
    %v690 = vld [vmem:[%s676 + $0x68] sm:$0xff]
    %v691 = vld [vmem:[%s676 + $0x70] sm:$0xff]
    %v692 = vld [vmem:[%s676 + $0x78] sm:$0xff]
    %s693 = scalar_lea.vmem %s3, 256
    %v694 = vld [vmem:[%s693] sm:$0xff]
    %v695 = vld [vmem:[%s693 + $0x8] sm:$0xff]
    %v696 = vld [vmem:[%s693 + $0x10] sm:$0xff]
    %v697 = vld [vmem:[%s693 + $0x18] sm:$0xff]
    %v698 = vld [vmem:[%s693 + $0x20] sm:$0xff]
    %v699 = vld [vmem:[%s693 + $0x28] sm:$0xff]
    %v700 = vld [vmem:[%s693 + $0x30] sm:$0xff]
    %v701 = vld [vmem:[%s693 + $0x38] sm:$0xff]
    %v702 = vld [vmem:[%s693 + $0x40] sm:$0xff]
    %v703 = vld [vmem:[%s693 + $0x48] sm:$0xff]
    %v704 = vld [vmem:[%s693 + $0x50] sm:$0xff]
    %v705 = vld [vmem:[%s693 + $0x58] sm:$0xff]
    %v706 = vld [vmem:[%s693 + $0x60] sm:$0xff]
    %v707 = vld [vmem:[%s693 + $0x68] sm:$0xff]
    %v708 = vld [vmem:[%s693 + $0x70] sm:$0xff]
    %v709 = vld [vmem:[%s693 + $0x78] sm:$0xff]
    %710 = vmatpush.msra.mxu0 %v709
    %711 = vmatpush.msra.mxu0 %v708
    %712 = vmatpush.msra.mxu0 %v707
    %713 = vmatpush.msra.mxu0 %v706
    %714 = vmatpush.msra.mxu0 %v705
    %715 = vmatpush.msra.mxu0 %v704
    %716 = vmatpush.msra.mxu0 %v703
    %717 = vmatpush.msra.mxu0 %v702
    %718 = vmatpush.msra.mxu0 %v701
    %719 = vmatpush.msra.mxu0 %v700
    %720 = vmatpush.msra.mxu0 %v699
    %721 = vmatpush.msra.mxu0 %v698
    %722 = vmatpush.msra.mxu0 %v697
    %723 = vmatpush.msra.mxu0 %v696
    %724 = vmatpush.msra.mxu0 %v695
    %725 = vmatpush.msra.mxu0 %v694
    %726 = vmatmul.f32.gmra.mxu0 %v201
    %v727 = vpop.f32.mrf.mxu0
    %v728 = vadd.f32 0.0, %v727
    %729 = vdwg.mxu0
    %730 = vmatpush.msra.mxu0 %v692
    %731 = vmatpush.msra.mxu0 %v691
    %732 = vmatpush.msra.mxu0 %v690
    %733 = vmatpush.msra.mxu0 %v689
    %734 = vmatpush.msra.mxu0 %v688
    %735 = vmatpush.msra.mxu0 %v687
    %736 = vmatpush.msra.mxu0 %v686
    %737 = vmatpush.msra.mxu0 %v685
    %738 = vmatpush.msra.mxu0 %v684
    %739 = vmatpush.msra.mxu0 %v683
    %740 = vmatpush.msra.mxu0 %v682
    %741 = vmatpush.msra.mxu0 %v681
    %742 = vmatpush.msra.mxu0 %v680
    %743 = vmatpush.msra.mxu0 %v679
    %744 = vmatpush.msra.mxu0 %v678
    %745 = vmatpush.msra.mxu0 %v677
    %746 = vmatmul.f32.gmra.mxu0 %v114
    %v747 = vpop.f32.mrf.mxu0
    %v748 = vadd.f32 %v728, %v747
    %749 = vdwg.mxu0
    %v750 = vld [vmem:[%s4] sm:$0x1]
    %v752 = vperm.slane %v750, 0
    %v754 = vadd.f32 %v748, %v752
    %v755 = vmax.f32 %v754, 0.0
    %v756 = vld [vmem:[%s5] sm:$0xff]
    %v757 = vld [vmem:[%s5 + $0x8] sm:$0xff]
    %v758 = vld [vmem:[%s5 + $0x10] sm:$0xff]
    %v759 = vld [vmem:[%s5 + $0x18] sm:$0xff]
    %v760 = vld [vmem:[%s5 + $0x20] sm:$0xff]
    %v761 = vld [vmem:[%s5 + $0x28] sm:$0xff]
    %v762 = vld [vmem:[%s5 + $0x30] sm:$0xff]
    %v763 = vld [vmem:[%s5 + $0x38] sm:$0xff]
    %v764 = vld [vmem:[%s5 + $0x40] sm:$0xff]
    %v765 = vld [vmem:[%s5 + $0x48] sm:$0xff]
    %v766 = vld [vmem:[%s5 + $0x50] sm:$0xff]
    %v767 = vld [vmem:[%s5 + $0x58] sm:$0xff]
    %v768 = vld [vmem:[%s5 + $0x60] sm:$0xff]
    %v769 = vld [vmem:[%s5 + $0x68] sm:$0xff]
    %v770 = vld [vmem:[%s5 + $0x70] sm:$0xff]
    %v771 = vld [vmem:[%s5 + $0x78] sm:$0xff]
    %v772 = vld [vmem:[%s3] sm:$0xff]
    %v773 = vld [vmem:[%s3 + $0x8] sm:$0xff]
    %v774 = vld [vmem:[%s3 + $0x10] sm:$0xff]
    %v775 = vld [vmem:[%s3 + $0x18] sm:$0xff]
    %v776 = vld [vmem:[%s3 + $0x20] sm:$0xff]
    %v777 = vld [vmem:[%s3 + $0x28] sm:$0xff]
    %v778 = vld [vmem:[%s3 + $0x30] sm:$0xff]
    %v779 = vld [vmem:[%s3 + $0x38] sm:$0xff]
    %v780 = vld [vmem:[%s3 + $0x40] sm:$0xff]
    %v781 = vld [vmem:[%s3 + $0x48] sm:$0xff]
    %v782 = vld [vmem:[%s3 + $0x50] sm:$0xff]
    %v783 = vld [vmem:[%s3 + $0x58] sm:$0xff]
    %v784 = vld [vmem:[%s3 + $0x60] sm:$0xff]
    %v785 = vld [vmem:[%s3 + $0x68] sm:$0xff]
    %v786 = vld [vmem:[%s3 + $0x70] sm:$0xff]
    %v787 = vld [vmem:[%s3 + $0x78] sm:$0xff]
    %788 = vmatpush.msra.mxu0 %v692
    %789 = vmatpush.msra.mxu0 %v691
    %790 = vmatpush.msra.mxu0 %v690
    %791 = vmatpush.msra.mxu0 %v689
    %792 = vmatpush.msra.mxu0 %v688
    %793 = vmatpush.msra.mxu0 %v687
    %794 = vmatpush.msra.mxu0 %v686
    %795 = vmatpush.msra.mxu0 %v685
    %796 = vmatpush.msra.mxu0 %v684
    %797 = vmatpush.msra.mxu0 %v683
    %798 = vmatpush.msra.mxu0 %v682
    %799 = vmatpush.msra.mxu0 %v681
    %800 = vmatpush.msra.mxu0 %v680
    %801 = vmatpush.msra.mxu0 %v679
    %802 = vmatpush.msra.mxu0 %v678
    %803 = vmatpush.msra.mxu0 %v677
    %804 = vmatmul.f32.gmra.mxu0 %v280
    %v805 = vpop.f32.mrf.mxu0
    %v806 = vadd.f32 0.0, %v805
    %807 = vdwg.mxu0
    %808 = vmatpush.msra.mxu0 %v787
    %809 = vmatpush.msra.mxu0 %v786
    %810 = vmatpush.msra.mxu0 %v785
    %811 = vmatpush.msra.mxu0 %v784
    %812 = vmatpush.msra.mxu0 %v783
    %813 = vmatpush.msra.mxu0 %v782
    %814 = vmatpush.msra.mxu0 %v781
    %815 = vmatpush.msra.mxu0 %v780
    %816 = vmatpush.msra.mxu0 %v779
    %817 = vmatpush.msra.mxu0 %v778
    %818 = vmatpush.msra.mxu0 %v777
    %819 = vmatpush.msra.mxu0 %v776
    %820 = vmatpush.msra.mxu0 %v775
    %821 = vmatpush.msra.mxu0 %v774
    %822 = vmatpush.msra.mxu0 %v773
    %823 = vmatpush.msra.mxu0 %v772
    %824 = vmatmul.f32.gmra.mxu0 %v201
    %v825 = vpop.f32.mrf.mxu0
    %v826 = vadd.f32 %v806, %v825
    %827 = vdwg.mxu0
    %828 = vmatpush.msra.mxu0 %v709
    %829 = vmatpush.msra.mxu0 %v708
    %830 = vmatpush.msra.mxu0 %v707
    %831 = vmatpush.msra.mxu0 %v706
    %832 = vmatpush.msra.mxu0 %v705
    %833 = vmatpush.msra.mxu0 %v704
    %834 = vmatpush.msra.mxu0 %v703
    %835 = vmatpush.msra.mxu0 %v702
    %836 = vmatpush.msra.mxu0 %v701
    %837 = vmatpush.msra.mxu0 %v700
    %838 = vmatpush.msra.mxu0 %v699
    %839 = vmatpush.msra.mxu0 %v698
    %840 = vmatpush.msra.mxu0 %v697
    %841 = vmatpush.msra.mxu0 %v696
    %842 = vmatpush.msra.mxu0 %v695
    %843 = vmatpush.msra.mxu0 %v694
    %844 = vmatmul.f32.gmra.mxu0 %v359
    %v845 = vpop.f32.mrf.mxu0
    %v846 = vadd.f32 0.0, %v845
    %847 = vdwg.mxu0
    %v848 = vadd.f32 %v826, %v846
    %v849 = vadd.f32 %v848, %v752
    %v850 = vmax.f32 %v849, 0.0
    %v851 = vld [vmem:[%s5 + $0x80] sm:$0xff]
    %v852 = vld [vmem:[%s5 + $0x88] sm:$0xff]
    %v853 = vld [vmem:[%s5 + $0x90] sm:$0xff]
    %v854 = vld [vmem:[%s5 + $0x98] sm:$0xff]
    %v855 = vld [vmem:[%s5 + $0xa0] sm:$0xff]
    %v856 = vld [vmem:[%s5 + $0xa8] sm:$0xff]
    %v857 = vld [vmem:[%s5 + $0xb0] sm:$0xff]
    %v858 = vld [vmem:[%s5 + $0xb8] sm:$0xff]
    %v859 = vld [vmem:[%s5 + $0xc0] sm:$0xff]
    %v860 = vld [vmem:[%s5 + $0xc8] sm:$0xff]
    %v861 = vld [vmem:[%s5 + $0xd0] sm:$0xff]
    %v862 = vld [vmem:[%s5 + $0xd8] sm:$0xff]
    %v863 = vld [vmem:[%s5 + $0xe0] sm:$0xff]
    %v864 = vld [vmem:[%s5 + $0xe8] sm:$0xff]
    %v865 = vld [vmem:[%s5 + $0xf0] sm:$0xff]
    %v866 = vld [vmem:[%s5 + $0xf8] sm:$0xff]
    %867 = vmatpush.msra.mxu0 %v866
    %868 = vmatpush.msra.mxu0 %v865
    %869 = vmatpush.msra.mxu0 %v864
    %870 = vmatpush.msra.mxu0 %v863
    %871 = vmatpush.msra.mxu0 %v862
    %872 = vmatpush.msra.mxu0 %v861
    %873 = vmatpush.msra.mxu0 %v860
    %874 = vmatpush.msra.mxu0 %v859
    %875 = vmatpush.msra.mxu0 %v858
    %876 = vmatpush.msra.mxu0 %v857
    %877 = vmatpush.msra.mxu0 %v856
    %878 = vmatpush.msra.mxu0 %v855
    %879 = vmatpush.msra.mxu0 %v854
    %880 = vmatpush.msra.mxu0 %v853
    %881 = vmatpush.msra.mxu0 %v852
    %882 = vmatpush.msra.mxu0 %v851
    %883 = vmatmul.f32.gmra.mxu0 %v850
    %v884 = vpop.f32.mrf.mxu0
    %v885 = vadd.f32 0.0, %v884
    %886 = vdwg.mxu0
    %887 = vmatpush.msra.mxu0 %v771
    %888 = vmatpush.msra.mxu0 %v770
    %889 = vmatpush.msra.mxu0 %v769
    %890 = vmatpush.msra.mxu0 %v768
    %891 = vmatpush.msra.mxu0 %v767
    %892 = vmatpush.msra.mxu0 %v766
    %893 = vmatpush.msra.mxu0 %v765
    %894 = vmatpush.msra.mxu0 %v764
    %895 = vmatpush.msra.mxu0 %v763
    %896 = vmatpush.msra.mxu0 %v762
    %897 = vmatpush.msra.mxu0 %v761
    %898 = vmatpush.msra.mxu0 %v760
    %899 = vmatpush.msra.mxu0 %v759
    %900 = vmatpush.msra.mxu0 %v758
    %901 = vmatpush.msra.mxu0 %v757
    %902 = vmatpush.msra.mxu0 %v756
    %903 = vmatmul.f32.gmra.mxu0 %v755
    %v904 = vpop.f32.mrf.mxu0
    %v905 = vadd.f32 %v885, %v904
    %906 = vdwg.mxu0
    %907 = vmatpush.msra.mxu0 %v692
    %908 = vmatpush.msra.mxu0 %v691
    %909 = vmatpush.msra.mxu0 %v690
    %910 = vmatpush.msra.mxu0 %v689
    %911 = vmatpush.msra.mxu0 %v688
    %912 = vmatpush.msra.mxu0 %v687
    %913 = vmatpush.msra.mxu0 %v686
    %914 = vmatpush.msra.mxu0 %v685
    %915 = vmatpush.msra.mxu0 %v684
    %916 = vmatpush.msra.mxu0 %v683
    %917 = vmatpush.msra.mxu0 %v682
    %918 = vmatpush.msra.mxu0 %v681
    %919 = vmatpush.msra.mxu0 %v680
    %920 = vmatpush.msra.mxu0 %v679
    %921 = vmatpush.msra.mxu0 %v678
    %922 = vmatpush.msra.mxu0 %v677
    %923 = vmatmul.f32.gmra.mxu0 %v438
    %v924 = vpop.f32.mrf.mxu0
    %v925 = vadd.f32 0.0, %v924
    %926 = vdwg.mxu0
    %927 = vmatpush.msra.mxu0 %v787
    %928 = vmatpush.msra.mxu0 %v786
    %929 = vmatpush.msra.mxu0 %v785
    %930 = vmatpush.msra.mxu0 %v784
    %931 = vmatpush.msra.mxu0 %v783
    %932 = vmatpush.msra.mxu0 %v782
    %933 = vmatpush.msra.mxu0 %v781
    %934 = vmatpush.msra.mxu0 %v780
    %935 = vmatpush.msra.mxu0 %v779
    %936 = vmatpush.msra.mxu0 %v778
    %937 = vmatpush.msra.mxu0 %v777
    %938 = vmatpush.msra.mxu0 %v776
    %939 = vmatpush.msra.mxu0 %v775
    %940 = vmatpush.msra.mxu0 %v774
    %941 = vmatpush.msra.mxu0 %v773
    %942 = vmatpush.msra.mxu0 %v772
    %943 = vmatmul.f32.gmra.mxu0 %v359
    %v944 = vpop.f32.mrf.mxu0
    %v945 = vadd.f32 %v925, %v944
    %946 = vdwg.mxu0
    %947 = vmatpush.msra.mxu0 %v709
    %948 = vmatpush.msra.mxu0 %v708
    %949 = vmatpush.msra.mxu0 %v707
    %950 = vmatpush.msra.mxu0 %v706
    %951 = vmatpush.msra.mxu0 %v705
    %952 = vmatpush.msra.mxu0 %v704
    %953 = vmatpush.msra.mxu0 %v703
    %954 = vmatpush.msra.mxu0 %v702
    %955 = vmatpush.msra.mxu0 %v701
    %956 = vmatpush.msra.mxu0 %v700
    %957 = vmatpush.msra.mxu0 %v699
    %958 = vmatpush.msra.mxu0 %v698
    %959 = vmatpush.msra.mxu0 %v697
    %960 = vmatpush.msra.mxu0 %v696
    %961 = vmatpush.msra.mxu0 %v695
    %962 = vmatpush.msra.mxu0 %v694
    %963 = vmatmul.f32.gmra.mxu0 %v517
    %v964 = vpop.f32.mrf.mxu0
    %v965 = vadd.f32 0.0, %v964
    %966 = vdwg.mxu0
    %v967 = vadd.f32 %v945, %v965
    %v968 = vadd.f32 %v967, %v752
    %v969 = vmax.f32 %v968, 0.0
    %v970 = vld [vmem:[%s5 + $0x100] sm:$0xff]
    %v971 = vld [vmem:[%s5 + $0x108] sm:$0xff]
    %v972 = vld [vmem:[%s5 + $0x110] sm:$0xff]
    %v973 = vld [vmem:[%s5 + $0x118] sm:$0xff]
    %v974 = vld [vmem:[%s5 + $0x120] sm:$0xff]
    %v975 = vld [vmem:[%s5 + $0x128] sm:$0xff]
    %v976 = vld [vmem:[%s5 + $0x130] sm:$0xff]
    %v977 = vld [vmem:[%s5 + $0x138] sm:$0xff]
    %v978 = vld [vmem:[%s5 + $0x140] sm:$0xff]
    %v979 = vld [vmem:[%s5 + $0x148] sm:$0xff]
    %v980 = vld [vmem:[%s5 + $0x150] sm:$0xff]
    %v981 = vld [vmem:[%s5 + $0x158] sm:$0xff]
    %v982 = vld [vmem:[%s5 + $0x160] sm:$0xff]
    %v983 = vld [vmem:[%s5 + $0x168] sm:$0xff]
    %v984 = vld [vmem:[%s5 + $0x170] sm:$0xff]
    %v985 = vld [vmem:[%s5 + $0x178] sm:$0xff]
    %986 = vmatpush.msra.mxu0 %v985
    %987 = vmatpush.msra.mxu0 %v984
    %988 = vmatpush.msra.mxu0 %v983
    %989 = vmatpush.msra.mxu0 %v982
    %990 = vmatpush.msra.mxu0 %v981
    %991 = vmatpush.msra.mxu0 %v980
    %992 = vmatpush.msra.mxu0 %v979
    %993 = vmatpush.msra.mxu0 %v978
    %994 = vmatpush.msra.mxu0 %v977
    %995 = vmatpush.msra.mxu0 %v976
    %996 = vmatpush.msra.mxu0 %v975
    %997 = vmatpush.msra.mxu0 %v974
    %998 = vmatpush.msra.mxu0 %v973
    %999 = vmatpush.msra.mxu0 %v972
    %1000 = vmatpush.msra.mxu0 %v971
    %1001 = vmatpush.msra.mxu0 %v970
    %1002 = vmatmul.f32.gmra.mxu0 %v969
    %v1003 = vpop.f32.mrf.mxu0
    %v1004 = vadd.f32 0.0, %v1003
    %1005 = vdwg.mxu0
    %v1006 = vadd.f32 %v905, %v1004
    %1007 = vmatpush.msra.mxu0 %v692
    %1008 = vmatpush.msra.mxu0 %v691
    %1009 = vmatpush.msra.mxu0 %v690
    %1010 = vmatpush.msra.mxu0 %v689
    %1011 = vmatpush.msra.mxu0 %v688
    %1012 = vmatpush.msra.mxu0 %v687
    %1013 = vmatpush.msra.mxu0 %v686
    %1014 = vmatpush.msra.mxu0 %v685
    %1015 = vmatpush.msra.mxu0 %v684
    %1016 = vmatpush.msra.mxu0 %v683
    %1017 = vmatpush.msra.mxu0 %v682
    %1018 = vmatpush.msra.mxu0 %v681
    %1019 = vmatpush.msra.mxu0 %v680
    %1020 = vmatpush.msra.mxu0 %v679
    %1021 = vmatpush.msra.mxu0 %v678
    %1022 = vmatpush.msra.mxu0 %v677
    %1023 = vmatmul.f32.gmra.mxu0 %v596
    %v1024 = vpop.f32.mrf.mxu0
    %v1025 = vadd.f32 0.0, %v1024
    %1026 = vdwg.mxu0
    %1027 = vmatpush.msra.mxu0 %v787
    %1028 = vmatpush.msra.mxu0 %v786
    %1029 = vmatpush.msra.mxu0 %v785
    %1030 = vmatpush.msra.mxu0 %v784
    %1031 = vmatpush.msra.mxu0 %v783
    %1032 = vmatpush.msra.mxu0 %v782
    %1033 = vmatpush.msra.mxu0 %v781
    %1034 = vmatpush.msra.mxu0 %v780
    %1035 = vmatpush.msra.mxu0 %v779
    %1036 = vmatpush.msra.mxu0 %v778
    %1037 = vmatpush.msra.mxu0 %v777
    %1038 = vmatpush.msra.mxu0 %v776
    %1039 = vmatpush.msra.mxu0 %v775
    %1040 = vmatpush.msra.mxu0 %v774
    %1041 = vmatpush.msra.mxu0 %v773
    %1042 = vmatpush.msra.mxu0 %v772
    %1043 = vmatmul.f32.gmra.mxu0 %v517
    %v1044 = vpop.f32.mrf.mxu0
    %v1045 = vadd.f32 %v1025, %v1044
    %1046 = vdwg.mxu0
    %1047 = vmatpush.msra.mxu0 %v709
    %1048 = vmatpush.msra.mxu0 %v708
    %1049 = vmatpush.msra.mxu0 %v707
    %1050 = vmatpush.msra.mxu0 %v706
    %1051 = vmatpush.msra.mxu0 %v705
    %1052 = vmatpush.msra.mxu0 %v704
    %1053 = vmatpush.msra.mxu0 %v703
    %1054 = vmatpush.msra.mxu0 %v702
    %1055 = vmatpush.msra.mxu0 %v701
    %1056 = vmatpush.msra.mxu0 %v700
    %1057 = vmatpush.msra.mxu0 %v699
    %1058 = vmatpush.msra.mxu0 %v698
    %1059 = vmatpush.msra.mxu0 %v697
    %1060 = vmatpush.msra.mxu0 %v696
    %1061 = vmatpush.msra.mxu0 %v695
    %1062 = vmatpush.msra.mxu0 %v694
    %1063 = vmatmul.f32.gmra.mxu0 %v675
    %v1064 = vpop.f32.mrf.mxu0
    %v1065 = vadd.f32 0.0, %v1064
    %1066 = vdwg.mxu0
    %v1067 = vadd.f32 %v1045, %v1065
    %v1068 = vadd.f32 %v1067, %v752
    %v1069 = vmax.f32 %v1068, 0.0
    %v1070 = vld [vmem:[%s5 + $0x180] sm:$0xff]
    %v1071 = vld [vmem:[%s5 + $0x188] sm:$0xff]
    %v1072 = vld [vmem:[%s5 + $0x190] sm:$0xff]
    %v1073 = vld [vmem:[%s5 + $0x198] sm:$0xff]
    %v1074 = vld [vmem:[%s5 + $0x1a0] sm:$0xff]
    %v1075 = vld [vmem:[%s5 + $0x1a8] sm:$0xff]
    %v1076 = vld [vmem:[%s5 + $0x1b0] sm:$0xff]
    %v1077 = vld [vmem:[%s5 + $0x1b8] sm:$0xff]
    %v1078 = vld [vmem:[%s5 + $0x1c0] sm:$0xff]
    %v1079 = vld [vmem:[%s5 + $0x1c8] sm:$0xff]
    %v1080 = vld [vmem:[%s5 + $0x1d0] sm:$0xff]
    %v1081 = vld [vmem:[%s5 + $0x1d8] sm:$0xff]
    %v1082 = vld [vmem:[%s5 + $0x1e0] sm:$0xff]
    %v1083 = vld [vmem:[%s5 + $0x1e8] sm:$0xff]
    %v1084 = vld [vmem:[%s5 + $0x1f0] sm:$0xff]
    %v1085 = vld [vmem:[%s5 + $0x1f8] sm:$0xff]
    %1086 = vmatpush.msra.mxu0 %v1085
    %1087 = vmatpush.msra.mxu0 %v1084
    %1088 = vmatpush.msra.mxu0 %v1083
    %1089 = vmatpush.msra.mxu0 %v1082
    %1090 = vmatpush.msra.mxu0 %v1081
    %1091 = vmatpush.msra.mxu0 %v1080
    %1092 = vmatpush.msra.mxu0 %v1079
    %1093 = vmatpush.msra.mxu0 %v1078
    %1094 = vmatpush.msra.mxu0 %v1077
    %1095 = vmatpush.msra.mxu0 %v1076
    %1096 = vmatpush.msra.mxu0 %v1075
    %1097 = vmatpush.msra.mxu0 %v1074
    %1098 = vmatpush.msra.mxu0 %v1073
    %1099 = vmatpush.msra.mxu0 %v1072
    %1100 = vmatpush.msra.mxu0 %v1071
    %1101 = vmatpush.msra.mxu0 %v1070
    %1102 = vmatmul.f32.gmra.mxu0 %v1069
    %v1103 = vpop.f32.mrf.mxu0
    %v1104 = vadd.f32 0.0, %v1103
    %1105 = vdwg.mxu0
    %v1106 = vadd.f32 %v1006, %v1104
    %v1107 = vld [vmem:[%s6] sm:$0x1]
    %v1109 = vperm.slane %v1107, 0
    %v1111 = vadd.f32 %v1106, %v1109
    %v1112 = vmax.f32 %v1111, 0.0
    %v1113 = vld [vmem:[%s7] sm:$0xff]
    %v1114 = vld [vmem:[%s7 + $0x8] sm:$0xff]
    %v1115 = vld [vmem:[%s7 + $0x10] sm:$0xff]
    %v1116 = vld [vmem:[%s7 + $0x18] sm:$0xff]
    %v1117 = vld [vmem:[%s7 + $0x20] sm:$0xff]
    %v1118 = vld [vmem:[%s7 + $0x28] sm:$0xff]
    %v1119 = vld [vmem:[%s7 + $0x30] sm:$0xff]
    %v1120 = vld [vmem:[%s7 + $0x38] sm:$0xff]
    %v1121 = vld [vmem:[%s8] sm:$0x1]
    %v1123 = vperm.slane %v1121, 0
    %v1126 = vsel %vm60, %v1112, 0
    %1128 = vmatpush.msra.mxu0 0.0
    %1129 = vmatpush.msra.mxu0 0.0
    %1130 = vmatpush.msra.mxu0 0.0
    %1131 = vmatpush.msra.mxu0 0.0
    %1132 = vmatpush.msra.mxu0 0.0
    %1133 = vmatpush.msra.mxu0 0.0
    %1134 = vmatpush.msra.mxu0 0.0
    %1135 = vmatpush.msra.mxu0 0.0
    %1136 = vmatpush.msra.mxu0 %v1120
    %1137 = vmatpush.msra.mxu0 %v1119
    %1138 = vmatpush.msra.mxu0 %v1118
    %1139 = vmatpush.msra.mxu0 %v1117
    %1140 = vmatpush.msra.mxu0 %v1116
    %1141 = vmatpush.msra.mxu0 %v1115
    %1142 = vmatpush.msra.mxu0 %v1114
    %1143 = vmatpush.msra.mxu0 %v1113
    %1144 = vmatmul.f32.gmra.mxu0 %v1126
    %v1145 = vpop.f32.mrf.mxu0
    %v1146 = vadd.f32 %v1123, %v1145
    %1147 = vdwg.mxu0
    %1148 = vst [vmem:[#allocation2] sm:$0x3] %v1146
    // Predicated region
    $region38: #{qnetwork_forward.1} parent=1 // pred_check
      _
    $region39: #{qnetwork_forward.1} parent=1 // pred_check_branch
      %1150 = sbr.rel (0) target = $region41
    $region40: #{qnetwork_forward.1} parent=1 // pred_region
      %1152 = vsyncadd [#allocation3], 0
      %s1154 = sshll.u32 [#allocation2], 4
      %s1155 = int_to_ptr.vmem [resolvable:$true] %s1154
      %s1156 = sshll.u32 %s9, 4
      %s1157 = int_to_ptr.hbm [resolvable:$true] %s1156
      %1159 = dma.vmem_to_hbm [thread:$0]  %s1155, 32, %s1157, [#allocation3]
    $region41: #{qnetwork_forward.1} parent=1 // pred_fallthru
      _
    // Predicated region
    $region42: #{qnetwork_forward.1} parent=1 // pred_check
      _
    $region43: #{qnetwork_forward.1} parent=1 // pred_check_branch
      %1161 = sbr.rel (0) target = $region45
    $region44: #{qnetwork_forward.1} parent=1 // pred_region
      %1163 = dma.done [#allocation3], 32
    $region45: #{qnetwork_forward.1} parent=1 // pred_fallthru
      _
    %1164 = vsyncpa [#allocation3], 1

</llo_original>
